<compile_context>
chip_gen: v6e
topology: v6e:2x2x1
jax: 0.10.0
libtpu: 0.0.40
codegen_flags: <defaults>
</compile_context>

<pallas_src>
import jax
import jax.numpy as jnp
from jax.experimental import pallas as pl
from jax.experimental.pallas import tpu as pltpu


def _round_up(v, m):
    return ((v + m - 1) // m) * m


# ----------------------------------------------------------------------------
# Pallas kernel: whole batch, ALL layers, one grid step.
# ----------------------------------------------------------------------------
def _decoder_kernel(g_ref, x_ref, w_ref, b_ref, h_ref, c_ref, hc_ref):
    # g_ref : [K*N, N]        stacked graph supports (layer-invariant)
    # x_ref : [B*N, Dpad]     layer-0 input x_t, zero-padded to the x-slot width
    # w_ref : [L, K*Dz, 4H]   packed GCN weights (zero rows for pad lanes)
    # b_ref : [L, 1, 4H]      per-layer bias
    # h_ref : [L, B*N, Hpad]  previous hidden states, zero-padded to Hpad
    # c_ref : [L, B*N, H]     previous cell states
    # hc_ref: [B*N, L*2H]     lane-dense packed output: per layer l,
    #                         lanes [l*2H : l*2H+H] = h_t, [l*2H+H : (l+1)*2H] = c_t
    N = g_ref.shape[1]
    K = g_ref.shape[0] // N
    BN, Dpad = x_ref.shape
    B = BN // N
    L, KDz, H4 = w_ref.shape
    H = H4 // 4
    Dz = KDz // K
    # NOTE: Dpad, Hpad (= Dz - Dpad) are multiples of 128, so every lane slice
    # below is vreg-aligned; N is a multiple of 8 so row slices are sublane-aligned.

    g = g_ref[...]                                   # [K*N, N], loaded once
    x_slot = x_ref[...]                              # [B*N, Dpad]

    pieces = []
    for l in range(L):                               # static unroll (small L)
        h_slot = h_ref[l]                            # [B*N, Hpad]
        # combined = [x_t | h_pre] (the torch.cat of the reference), as a value
        z = jnp.concatenate([x_slot, h_slot], axis=-1)            # [B*N, Dz]

        # --- graph conv: ONE MXU push for all K supports and the whole batch.
        # Lay z node-major with batch packed into lanes (aligned slices/concats).
        z_nb = jnp.concatenate(
            [z[b * N:(b + 1) * N, :] for b in range(B)], axis=-1)  # [N, B*Dz]
        s = jnp.dot(g, z_nb, preferred_element_type=jnp.float32)  # [K*N, B*Dz]

        # Rearrange [(k,n),(b,p)] -> [(b,n),(k,p)] with 128-aligned lane slices
        # and 8-aligned row slices only (no reshapes).
        s2 = jnp.concatenate(
            [jnp.concatenate(
                [s[k * N:(k + 1) * N, b * Dz:(b + 1) * Dz] for k in range(K)],
                axis=-1)
             for b in range(B)],
            axis=0)                                               # [B*N, K*Dz]

        # --- projection: ONE MXU push over all B*N rows, contraction K*Dz.
        gates = (jnp.dot(s2, w_ref[l], preferred_element_type=jnp.float32)
                 + b_ref[l])                                      # [B*N, 4H]

        # Fused nonlinearities: one sigmoid over the 3H i/f/o lanes, one tanh.
        sig = jax.nn.sigmoid(gates[:, :3 * H])
        i = sig[:, 0 * H:1 * H]
        f = sig[:, 1 * H:2 * H]
        o = sig[:, 2 * H:3 * H]
        gg = jnp.tanh(gates[:, 3 * H:])

        c_t = f * c_ref[l] + i * gg
        h_t = o * jnp.tanh(c_t)
        pieces.append(h_t)
        pieces.append(c_t)

        # h_t becomes the next layer's x-slot; pad lanes are explicit zeros and
        # their weight rows are zero-padded too, so the math is unchanged.
        if l + 1 < L:
            x_slot = jnp.concatenate(
                [h_t, jnp.zeros((BN, Dpad - H), jnp.float32)], axis=-1)

    # Single lane-dense store of all layers' (h || c).
    hc_ref[...] = jnp.concatenate(pieces, axis=-1)                # [B*N, L*2H]


# ----------------------------------------------------------------------------
# Host-side weight packing (done ONCE, not per decode step).
# PyTorch GCN weight for layer l is W_l [K*(din_l+H), 4H], rows k-major and,
# within k, [x-part (din_l) ; h-part (H)].  We pad the x-part to Dpad and the
# h-part to Hpad (both multiples of 128) so every layer shares one
# [K*Dz, 4H] block with Dz = Dpad + Hpad; pad rows are zero.
# ----------------------------------------------------------------------------
def pack_decoder_params(params, dim_in, dim_hidden, K):
    H = dim_hidden
    H4 = 4 * H
    Hpad = _round_up(H, 128)
    Dpad = _round_up(max(dim_in, H), 128)
    Dz = Dpad + Hpad
    w_blocks, b_blocks = [], []
    for idx, (W, b) in enumerate(params):
        din = dim_in if idx == 0 else H             # uniform hidden size per layer
        Wk = jnp.asarray(W, jnp.float32).reshape(K, din + H, H4)
        W_x = jnp.pad(Wk[:, :din, :], ((0, 0), (0, Dpad - din), (0, 0)))
        W_h = jnp.pad(Wk[:, din:, :], ((0, 0), (0, Hpad - H), (0, 0)))
        w_blocks.append(jnp.concatenate([W_x, W_h], axis=1).reshape(K * Dz, H4))
        b_blocks.append(jnp.asarray(b, jnp.float32).reshape(1, H4))
    return jnp.stack(w_blocks, axis=0), jnp.stack(b_blocks, axis=0)


# ----------------------------------------------------------------------------
# Decoder forward: all layers, whole batch, one pallas_call, one grid step.
# ----------------------------------------------------------------------------
def decoder_forward(G, x_t, h_list, c_list, W_all, b_all):
    K, N, _ = G.shape
    B, _, C = x_t.shape
    H = h_list[0].shape[-1]
    L, KDz, H4 = W_all.shape
    BN = B * N

    # Tie the kernel's slot layout to pack_decoder_params (review concern).
    assert H4 == 4 * H, "packed weight width must be 4*H"
    assert KDz % K == 0
    Dz = KDz // K
    Hpad = _round_up(H, 128)
    Dpad = Dz - Hpad
    assert Dpad == _round_up(max(C, H), 128) and Dpad >= max(C, H)
    assert all(t.shape[-1] == H for t in h_list + c_list), \
        "all layers must share the same hidden width H"
    assert L == len(h_list) == len(c_list)
    assert N % 8 == 0, "node count must be sublane-aligned for the demo kernel"

    # Cheap host-side layout glue (contiguous reshapes / zero pads only, once).
    G_stack = G.reshape(K * N, N).astype(jnp.float32)                    # [K*N, N]
    x_pad = jnp.pad(x_t.astype(jnp.float32).reshape(BN, C),
                    ((0, 0), (0, Dpad - C)))                             # [BN, Dpad]
    h_all = jnp.pad(jnp.stack(h_list, 0).astype(jnp.float32).reshape(L, BN, H),
                    ((0, 0), (0, 0), (0, Hpad - H)))                     # [L, BN, Hpad]
    c_all = jnp.stack(c_list, 0).astype(jnp.float32).reshape(L, BN, H)   # [L, BN, H]

    grid_spec = pltpu.PrefetchScalarGridSpec(
        num_scalar_prefetch=0,
        grid=(1,),                                    # single step: everything fits VMEM
        in_specs=[
            pl.BlockSpec((K * N, N), lambda i: (0, 0)),          # G (full)
            pl.BlockSpec((BN, Dpad), lambda i: (0, 0)),          # layer-0 input
            pl.BlockSpec((L, KDz, H4), lambda i: (0, 0, 0)),     # all packed W
            pl.BlockSpec((L, 1, H4), lambda i: (0, 0, 0)),       # all biases
            pl.BlockSpec((L, BN, Hpad), lambda i: (0, 0, 0)),    # all h_pre
            pl.BlockSpec((L, BN, H), lambda i: (0, 0, 0)),       # all c_pre
        ],
        out_specs=pl.BlockSpec((BN, L * 2 * H), lambda i: (0, 0)),  # lane-dense
    )

    hc = pl.pallas_call(
        _decoder_kernel,
        out_shape=jax.ShapeDtypeStruct((BN, L * 2 * H), jnp.float32),
        grid_spec=grid_spec,
        compiler_params=pltpu.CompilerParams(
            dimension_semantics=("arbitrary",)),
    )(G_stack, x_pad, W_all, b_all, h_all, c_all)

    hc = hc.reshape(B, N, L, 2 * H)
    h_lst = [hc[:, :, l, :H] for l in range(L)]
    c_lst = [hc[:, :, l, H:] for l in range(L)]
    return h_lst[-1], h_lst, c_lst


# ----------------------------------------------------------------------------
# Pure-JAX reference (mirrors the PyTorch forward) for the correctness check.
# ----------------------------------------------------------------------------
def _cell_ref(G, x_t, h_pre, c_pre, W, b):
    K = G.shape[0]
    combined = jnp.concatenate([x_t, h_pre], axis=-1)
    supports = [jnp.einsum('ij,bjp->bip', G[k], combined) for k in range(K)]
    support_cat = jnp.concatenate(supports, axis=-1)
    gates = jnp.einsum('bip,pq->biq', support_cat, W) + b
    gc_i, gc_f, gc_o, gc_g = jnp.split(gates, 4, axis=-1)
    i = jax.nn.sigmoid(gc_i)
    f = jax.nn.sigmoid(gc_f)
    o = jax.nn.sigmoid(gc_o)
    g = jnp.tanh(gc_g)
    c_t = f * c_pre + i * g
    h_t = o * jnp.tanh(c_t)
    return h_t, c_t


def _decoder_ref(params, G, x_t, h_list, c_list):
    cur = x_t
    h_lst, c_lst = [], []
    for (W, b), h_pre, c_pre in zip(params, h_list, c_list):
        h_t, c_t = _cell_ref(G, cur, h_pre, c_pre, W, b)
        h_lst.append(h_t)
        c_lst.append(c_t)
        cur = h_t
    return cur, h_lst, c_lst


# ----------------------------------------------------------------------------
# Deterministic parameter init (xavier_normal for W, zeros for b).
# ----------------------------------------------------------------------------
def init_decoder_params(key, num_nodes, dim_out, dim_hidden, K, num_layers):
    dims = [dim_hidden] * num_layers
    params = []
    for i in range(num_layers):
        cur_input_dim = dim_out if i == 0 else dims[i - 1]
        d_in = K * (cur_input_dim + dims[i])
        d_out = 4 * dims[i]
        key, sub = jax.random.split(key)
        std = (2.0 / (d_in + d_out)) ** 0.5            # xavier_normal_, gain=1
        W = std * jax.random.normal(sub, (d_in, d_out), dtype=jnp.float32)
        b = jnp.zeros((d_out,), dtype=jnp.float32)
        params.append((W, b))
    return params


if __name__ == "__main__":
    # Small synthetic shapes consistent with the module.
    B, N, K = 2, 8, 3
    dim_out = 4          # C: decoder input/output feature dim
    dim_hidden = 32      # H
    num_layers = 2

    key = jax.random.PRNGKey(0)
    k_param, k_g, k_x, k_h, k_c = jax.random.split(key, 5)

    params = init_decoder_params(k_param, N, dim_out, dim_hidden, K, num_layers)
    W_all, b_all = pack_decoder_params(params, dim_out, dim_hidden, K)

    G = jax.random.normal(k_g, (K, N, N), dtype=jnp.float32)
    x_t = jax.random.normal(k_x, (B, N, dim_out), dtype=jnp.float32)
    h_keys = jax.random.split(k_h, num_layers)
    c_keys = jax.random.split(k_c, num_layers)
    h_list = [jax.random.normal(h_keys[i], (B, N, dim_hidden), dtype=jnp.float32)
              for i in range(num_layers)]
    c_list = [jax.random.normal(c_keys[i], (B, N, dim_hidden), dtype=jnp.float32)
              for i in range(num_layers)]

    fwd = jax.jit(decoder_forward)
    out, h_lst, c_lst = fwd(G, x_t, h_list, c_list, W_all, b_all)
    jax.block_until_ready(out)
    for t in h_lst + c_lst:
        jax.block_until_ready(t)

    # Correctness check vs. pure-JAX reference of the PyTorch semantics.
    out_ref, h_ref, c_ref = _decoder_ref(params, G, x_t, h_list, c_list)
    assert jnp.allclose(out, out_ref, atol=1e-4, rtol=1e-4)
    for a, b_ in zip(h_lst + c_lst, h_ref + c_ref):
        assert jnp.allclose(a, b_, atol=1e-4, rtol=1e-4)

    print("KERNEL_OK")
</pallas_src>

<mosaic_0001>
module attributes {stable_mosaic.version = 11 : i64} {
  func.func @_decoder_kernel(%arg0: i32, %arg1: memref<24x8xf32, #tpu.memory_space<vmem>>, %arg2: memref<16x128xf32, #tpu.memory_space<vmem>>, %arg3: memref<2x768x128xf32, #tpu.memory_space<vmem>>, %arg4: memref<2x1x128xf32, #tpu.memory_space<vmem>>, %arg5: memref<2x16x128xf32, #tpu.memory_space<vmem>>, %arg6: memref<2x16x32xf32, #tpu.memory_space<vmem>>, %arg7: memref<16x128xf32, #tpu.memory_space<vmem>>) attributes {dimension_semantics = [#tpu.dimension_semantics<arbitrary>], iteration_bounds = array<i64: 1>, scalar_prefetch = 0 : i64, scratch_operands = 0 : i64, tpu.core_type = #tpu.core_type<tc>, window_params = [{pipeline_mode = #tpu.pipeline_mode<synchronous>, transform_indices = @transform_0, window_bounds = array<i64: 24, 8>}, {pipeline_mode = #tpu.pipeline_mode<synchronous>, transform_indices = @transform_1, window_bounds = array<i64: 16, 128>}, {pipeline_mode = #tpu.pipeline_mode<synchronous>, transform_indices = @transform_2, window_bounds = array<i64: 2, 768, 128>}, {pipeline_mode = #tpu.pipeline_mode<synchronous>, transform_indices = @transform_3, window_bounds = array<i64: 2, 1, 128>}, {pipeline_mode = #tpu.pipeline_mode<synchronous>, transform_indices = @transform_4, window_bounds = array<i64: 2, 16, 128>}, {pipeline_mode = #tpu.pipeline_mode<synchronous>, transform_indices = @transform_5, window_bounds = array<i64: 2, 16, 32>}, {pipeline_mode = #tpu.pipeline_mode<synchronous>, transform_indices = @transform_6, window_bounds = array<i64: 16, 128>}]} {
    %c0 = arith.constant 0 : index
    %c0_0 = arith.constant 0 : index
    %0 = vector.load %arg1[%c0, %c0_0] : memref<24x8xf32, #tpu.memory_space<vmem>>, vector<24x8xf32>
    %c0_1 = arith.constant 0 : index
    %c0_2 = arith.constant 0 : index
    %1 = vector.load %arg2[%c0_1, %c0_2] : memref<16x128xf32, #tpu.memory_space<vmem>>, vector<16x128xf32>
    %c0_3 = arith.constant 0 : index
    %c0_4 = arith.constant 0 : index
    %c0_5 = arith.constant 0 : index
    %2 = vector.load %arg5[%c0_3, %c0_4, %c0_5] : memref<2x16x128xf32, #tpu.memory_space<vmem>>, vector<1x16x128xf32>
    %3 = vector.shape_cast %2 : vector<1x16x128xf32> to vector<16x128xf32>
    %4 = tpu.concatenate %1, %3 in 1 : vector<16x128xf32>, vector<16x128xf32> -> vector<16x256xf32>
    %5 = vector.extract_strided_slice %4 {offsets = [0, 0], sizes = [8, 256], strides = [1, 1]} : vector<16x256xf32> to vector<8x256xf32>
    %6 = vector.extract_strided_slice %4 {offsets = [8, 0], sizes = [8, 256], strides = [1, 1]} : vector<16x256xf32> to vector<8x256xf32>
    %7 = tpu.concatenate %5, %6 in 1 : vector<8x256xf32>, vector<8x256xf32> -> vector<8x512xf32>
    %cst = arith.constant dense<0.000000e+00> : vector<24x512xf32>
    %8 = tpu.matmul %0, %7, %cst {dimension_numbers = #tpu.dot_dimension_numbers<[1], [0], [0], [1], [0, 0, 1, 1], [], []>} : vector<24x8xf32>, vector<8x512xf32>, vector<24x512xf32> -> vector<24x512xf32>
    %9 = vector.extract_strided_slice %8 {offsets = [0, 0], sizes = [8, 256], strides = [1, 1]} : vector<24x512xf32> to vector<8x256xf32>
    %10 = vector.extract_strided_slice %8 {offsets = [8, 0], sizes = [8, 256], strides = [1, 1]} : vector<24x512xf32> to vector<8x256xf32>
    %11 = vector.extract_strided_slice %8 {offsets = [16, 0], sizes = [8, 256], strides = [1, 1]} : vector<24x512xf32> to vector<8x256xf32>
    %12 = tpu.concatenate %9, %10, %11 in 1 : vector<8x256xf32>, vector<8x256xf32>, vector<8x256xf32> -> vector<8x768xf32>
    %13 = vector.extract_strided_slice %8 {offsets = [0, 256], sizes = [8, 256], strides = [1, 1]} : vector<24x512xf32> to vector<8x256xf32>
    %14 = vector.extract_strided_slice %8 {offsets = [8, 256], sizes = [8, 256], strides = [1, 1]} : vector<24x512xf32> to vector<8x256xf32>
    %15 = vector.extract_strided_slice %8 {offsets = [16, 256], sizes = [8, 256], strides = [1, 1]} : vector<24x512xf32> to vector<8x256xf32>
    %16 = tpu.concatenate %13, %14, %15 in 1 : vector<8x256xf32>, vector<8x256xf32>, vector<8x256xf32> -> vector<8x768xf32>
    %17 = tpu.concatenate %12, %16 in 0 : vector<8x768xf32>, vector<8x768xf32> -> vector<16x768xf32>
    %c0_6 = arith.constant 0 : index
    %c0_7 = arith.constant 0 : index
    %c0_8 = arith.constant 0 : index
    %18 = vector.load %arg3[%c0_6, %c0_7, %c0_8] : memref<2x768x128xf32, #tpu.memory_space<vmem>>, vector<1x768x128xf32>
    %19 = vector.shape_cast %18 : vector<1x768x128xf32> to vector<768x128xf32>
    %cst_9 = arith.constant dense<0.000000e+00> : vector<16x128xf32>
    %20 = tpu.matmul %17, %19, %cst_9 {dimension_numbers = #tpu.dot_dimension_numbers<[1], [0], [0], [1], [0, 0, 1, 1], [], []>} : vector<16x768xf32>, vector<768x128xf32>, vector<16x128xf32> -> vector<16x128xf32>
    %c0_10 = arith.constant 0 : index
    %c0_11 = arith.constant 0 : index
    %c0_12 = arith.constant 0 : index
    %21 = vector.load %arg4[%c0_10, %c0_11, %c0_12] : memref<2x1x128xf32, #tpu.memory_space<vmem>>, vector<1x1x128xf32>
    %22 = vector.shape_cast %21 : vector<1x1x128xf32> to vector<1x128xf32>
    %23 = vector.broadcast %22 : vector<1x128xf32> to vector<16x128xf32>
    %24 = arith.addf %20, %23 : vector<16x128xf32>
    %25 = vector.extract_strided_slice %24 {offsets = [0, 0], sizes = [16, 96], strides = [1, 1]} : vector<16x128xf32> to vector<16x96xf32>
    %26 = arith.negf %25 : vector<16x96xf32>
    %27 = math.exp %26 : vector<16x96xf32>
    %cst_13 = arith.constant 1.000000e+00 : f32
    %28 = vector.broadcast %cst_13 : f32 to vector<16x96xf32>
    %29 = arith.addf %28, %27 : vector<16x96xf32>
    %30 = arith.divf %28, %29 : vector<16x96xf32>
    %31 = vector.extract_strided_slice %30 {offsets = [0, 0], sizes = [16, 32], strides = [1, 1]} : vector<16x96xf32> to vector<16x32xf32>
    %32 = vector.extract_strided_slice %30 {offsets = [0, 32], sizes = [16, 32], strides = [1, 1]} : vector<16x96xf32> to vector<16x32xf32>
    %33 = vector.extract_strided_slice %30 {offsets = [0, 64], sizes = [16, 32], strides = [1, 1]} : vector<16x96xf32> to vector<16x32xf32>
    %34 = vector.extract_strided_slice %24 {offsets = [0, 96], sizes = [16, 32], strides = [1, 1]} : vector<16x128xf32> to vector<16x32xf32>
    %35 = math.tanh %34 : vector<16x32xf32>
    %c0_14 = arith.constant 0 : index
    %c0_15 = arith.constant 0 : index
    %c0_16 = arith.constant 0 : index
    %36 = vector.load %arg6[%c0_14, %c0_15, %c0_16] : memref<2x16x32xf32, #tpu.memory_space<vmem>>, vector<1x16x32xf32>
    %37 = vector.shape_cast %36 : vector<1x16x32xf32> to vector<16x32xf32>
    %38 = arith.mulf %32, %37 : vector<16x32xf32>
    %39 = arith.mulf %31, %35 : vector<16x32xf32>
    %40 = arith.addf %38, %39 : vector<16x32xf32>
    %41 = math.tanh %40 : vector<16x32xf32>
    %42 = arith.mulf %33, %41 : vector<16x32xf32>
    %cst_17 = arith.constant 0.000000e+00 : f32
    %43 = vector.broadcast %cst_17 : f32 to vector<16x96xf32>
    %44 = tpu.concatenate %42, %43 in 1 : vector<16x32xf32>, vector<16x96xf32> -> vector<16x128xf32>
    %c1 = arith.constant 1 : index
    %c0_18 = arith.constant 0 : index
    %c0_19 = arith.constant 0 : index
    %45 = vector.load %arg5[%c1, %c0_18, %c0_19] : memref<2x16x128xf32, #tpu.memory_space<vmem>>, vector<1x16x128xf32>
    %46 = vector.shape_cast %45 : vector<1x16x128xf32> to vector<16x128xf32>
    %47 = tpu.concatenate %44, %46 in 1 : vector<16x128xf32>, vector<16x128xf32> -> vector<16x256xf32>
    %48 = vector.extract_strided_slice %47 {offsets = [0, 0], sizes = [8, 256], strides = [1, 1]} : vector<16x256xf32> to vector<8x256xf32>
    %49 = vector.extract_strided_slice %47 {offsets = [8, 0], sizes = [8, 256], strides = [1, 1]} : vector<16x256xf32> to vector<8x256xf32>
    %50 = tpu.concatenate %48, %49 in 1 : vector<8x256xf32>, vector<8x256xf32> -> vector<8x512xf32>
    %cst_20 = arith.constant dense<0.000000e+00> : vector<24x512xf32>
    %51 = tpu.matmul %0, %50, %cst_20 {dimension_numbers = #tpu.dot_dimension_numbers<[1], [0], [0], [1], [0, 0, 1, 1], [], []>} : vector<24x8xf32>, vector<8x512xf32>, vector<24x512xf32> -> vector<24x512xf32>
    %52 = vector.extract_strided_slice %51 {offsets = [0, 0], sizes = [8, 256], strides = [1, 1]} : vector<24x512xf32> to vector<8x256xf32>
    %53 = vector.extract_strided_slice %51 {offsets = [8, 0], sizes = [8, 256], strides = [1, 1]} : vector<24x512xf32> to vector<8x256xf32>
    %54 = vector.extract_strided_slice %51 {offsets = [16, 0], sizes = [8, 256], strides = [1, 1]} : vector<24x512xf32> to vector<8x256xf32>
    %55 = tpu.concatenate %52, %53, %54 in 1 : vector<8x256xf32>, vector<8x256xf32>, vector<8x256xf32> -> vector<8x768xf32>
    %56 = vector.extract_strided_slice %51 {offsets = [0, 256], sizes = [8, 256], strides = [1, 1]} : vector<24x512xf32> to vector<8x256xf32>
    %57 = vector.extract_strided_slice %51 {offsets = [8, 256], sizes = [8, 256], strides = [1, 1]} : vector<24x512xf32> to vector<8x256xf32>
    %58 = vector.extract_strided_slice %51 {offsets = [16, 256], sizes = [8, 256], strides = [1, 1]} : vector<24x512xf32> to vector<8x256xf32>
    %59 = tpu.concatenate %56, %57, %58 in 1 : vector<8x256xf32>, vector<8x256xf32>, vector<8x256xf32> -> vector<8x768xf32>
    %60 = tpu.concatenate %55, %59 in 0 : vector<8x768xf32>, vector<8x768xf32> -> vector<16x768xf32>
    %c1_21 = arith.constant 1 : index
    %c0_22 = arith.constant 0 : index
    %c0_23 = arith.constant 0 : index
    %61 = vector.load %arg3[%c1_21, %c0_22, %c0_23] : memref<2x768x128xf32, #tpu.memory_space<vmem>>, vector<1x768x128xf32>
    %62 = vector.shape_cast %61 : vector<1x768x128xf32> to vector<768x128xf32>
    %cst_24 = arith.constant dense<0.000000e+00> : vector<16x128xf32>
    %63 = tpu.matmul %60, %62, %cst_24 {dimension_numbers = #tpu.dot_dimension_numbers<[1], [0], [0], [1], [0, 0, 1, 1], [], []>} : vector<16x768xf32>, vector<768x128xf32>, vector<16x128xf32> -> vector<16x128xf32>
    %c1_25 = arith.constant 1 : index
    %c0_26 = arith.constant 0 : index
    %c0_27 = arith.constant 0 : index
    %64 = vector.load %arg4[%c1_25, %c0_26, %c0_27] : memref<2x1x128xf32, #tpu.memory_space<vmem>>, vector<1x1x128xf32>
    %65 = vector.shape_cast %64 : vector<1x1x128xf32> to vector<1x128xf32>
    %66 = vector.broadcast %65 : vector<1x128xf32> to vector<16x128xf32>
    %67 = arith.addf %63, %66 : vector<16x128xf32>
    %68 = vector.extract_strided_slice %67 {offsets = [0, 0], sizes = [16, 96], strides = [1, 1]} : vector<16x128xf32> to vector<16x96xf32>
    %69 = arith.negf %68 : vector<16x96xf32>
    %70 = math.exp %69 : vector<16x96xf32>
    %cst_28 = arith.constant 1.000000e+00 : f32
    %71 = vector.broadcast %cst_28 : f32 to vector<16x96xf32>
    %72 = arith.addf %71, %70 : vector<16x96xf32>
    %73 = arith.divf %71, %72 : vector<16x96xf32>
    %74 = vector.extract_strided_slice %73 {offsets = [0, 0], sizes = [16, 32], strides = [1, 1]} : vector<16x96xf32> to vector<16x32xf32>
    %75 = vector.extract_strided_slice %73 {offsets = [0, 32], sizes = [16, 32], strides = [1, 1]} : vector<16x96xf32> to vector<16x32xf32>
    %76 = vector.extract_strided_slice %73 {offsets = [0, 64], sizes = [16, 32], strides = [1, 1]} : vector<16x96xf32> to vector<16x32xf32>
    %77 = vector.extract_strided_slice %67 {offsets = [0, 96], sizes = [16, 32], strides = [1, 1]} : vector<16x128xf32> to vector<16x32xf32>
    %78 = math.tanh %77 : vector<16x32xf32>
    %c1_29 = arith.constant 1 : index
    %c0_30 = arith.constant 0 : index
    %c0_31 = arith.constant 0 : index
    %79 = vector.load %arg6[%c1_29, %c0_30, %c0_31] : memref<2x16x32xf32, #tpu.memory_space<vmem>>, vector<1x16x32xf32>
    %80 = vector.shape_cast %79 : vector<1x16x32xf32> to vector<16x32xf32>
    %81 = arith.mulf %75, %80 : vector<16x32xf32>
    %82 = arith.mulf %74, %78 : vector<16x32xf32>
    %83 = arith.addf %81, %82 : vector<16x32xf32>
    %84 = math.tanh %83 : vector<16x32xf32>
    %85 = arith.mulf %76, %84 : vector<16x32xf32>
    %86 = tpu.concatenate %42, %40, %85, %83 in 1 : vector<16x32xf32>, vector<16x32xf32>, vector<16x32xf32>, vector<16x32xf32> -> vector<16x128xf32>
    %c0_32 = arith.constant 0 : index
    %c0_33 = arith.constant 0 : index
    %87 = vector.load %arg7[%c0_32, %c0_33] : memref<16x128xf32, #tpu.memory_space<vmem>>, vector<16x128xf32>
    tpu.vector_store %arg7[%c0_32, %c0_33], %86 {strides = array<i32>} : memref<16x128xf32, #tpu.memory_space<vmem>>, vector<16x128xf32>,
    return
  }
  func.func @transform_0(%arg0: i32) -> (i32, i32) {
    %c0_i32 = arith.constant 0 : i32
    %c0_i32_0 = arith.constant 0 : i32
    %c0_i32_1 = arith.constant 0 : i32
    return %c0_i32, %c0_i32_0 : i32, i32
  }
  func.func @transform_1(%arg0: i32) -> (i32, i32) {
    %c0_i32 = arith.constant 0 : i32
    %c0_i32_0 = arith.constant 0 : i32
    %c0_i32_1 = arith.constant 0 : i32
    return %c0_i32, %c0_i32_0 : i32, i32
  }
  func.func @transform_2(%arg0: i32) -> (i32, i32, i32) {
    %c0_i32 = arith.constant 0 : i32
    %c0_i32_0 = arith.constant 0 : i32
    %c0_i32_1 = arith.constant 0 : i32
    %c0_i32_2 = arith.constant 0 : i32
    return %c0_i32, %c0_i32_0, %c0_i32_1 : i32, i32, i32
  }
  func.func @transform_3(%arg0: i32) -> (i32, i32, i32) {
    %c0_i32 = arith.constant 0 : i32
    %c0_i32_0 = arith.constant 0 : i32
    %c0_i32_1 = arith.constant 0 : i32
    %c0_i32_2 = arith.constant 0 : i32
    return %c0_i32, %c0_i32_0, %c0_i32_1 : i32, i32, i32
  }
  func.func @transform_4(%arg0: i32) -> (i32, i32, i32) {
    %c0_i32 = arith.constant 0 : i32
    %c0_i32_0 = arith.constant 0 : i32
    %c0_i32_1 = arith.constant 0 : i32
    %c0_i32_2 = arith.constant 0 : i32
    return %c0_i32, %c0_i32_0, %c0_i32_1 : i32, i32, i32
  }
  func.func @transform_5(%arg0: i32) -> (i32, i32, i32) {
    %c0_i32 = arith.constant 0 : i32
    %c0_i32_0 = arith.constant 0 : i32
    %c0_i32_1 = arith.constant 0 : i32
    %c0_i32_2 = arith.constant 0 : i32
    return %c0_i32, %c0_i32_0, %c0_i32_1 : i32, i32, i32
  }
  func.func @transform_6(%arg0: i32) -> (i32, i32) {
    %c0_i32 = arith.constant 0 : i32
    %c0_i32_0 = arith.constant 0 : i32
    %c0_i32_1 = arith.constant 0 : i32
    return %c0_i32, %c0_i32_0 : i32, i32
  }
}

</mosaic_0001>

<llo_original>
// kernel: decoder_forward.1
$region0: #{decoder_forward.1}
  #allocation0 [shape = 'u32[]', space=smem, size = 0x4, offset = 0x4, fixed_abs, tag = 'smem constant byte address 0x4 - core index']
  #allocation1 [shape = 'u32[144,128]{1,0:T(1,128)}', space=vmem, size = 0x12000, scoped, tag = 'internal scratch']
  %s0 = inlined_call_operand.vmem [shape: f32[24,8], index: 0, kind: input, shape index: {}]
  %s1 = inlined_call_operand.vmem [shape: f32[16,128], index: 1, kind: input, shape index: {}]
  %s2 = inlined_call_operand.hbm [shape: f32[2,768,128], index: 2, kind: input, shape index: {}]
  %s3 = inlined_call_operand.vmem [shape: f32[2,1,128], index: 3, kind: input, shape index: {}]
  %s4 = inlined_call_operand.vmem [shape: f32[2,16,128], index: 4, kind: input, shape index: {}]
  %s5 = inlined_call_operand.vmem [shape: f32[2,16,32], index: 5, kind: input, shape index: {}]
  %s6 = inlined_call_operand.vmem [shape: f32[16,128], index: 6, kind: output, shape index: {}]
  %s7 = sld [smem:[#allocation0]]
  $region38: #{decoder_forward.1} parent=0
    _
  %s9 = ssub.s32 1, %s7
  %s10 = scalar_select 0, %s9, %s7
  $region1: #{decoder_forward.1} parent=0
    #allocation2 [shape = 'u8[786432]{0}', space=vmem, size = 0xc0000, scoped, tag = 'input window, operand 2, single buffered']
    #allocation3 [shape = 's32[1]{0}', space=sflag, size = 0x4, scoped, tag = 'scoped memory for decoder_forward.1']
    %11 = vsyncpa [#allocation3], 0
    // Predicated region
    $region2: #{decoder_forward.1} parent=1 // pred_check
      _
    $region3: #{decoder_forward.1} parent=1 // pred_check_branch
      %13 = sbr.rel (0) target = $region5
    $region4: #{decoder_forward.1} parent=1 // pred_region
      _
    $region5: #{decoder_forward.1} parent=1 // pred_fallthru
      _
    // Predicated region
    $region6: #{decoder_forward.1} parent=1 // pred_check
      _
    $region7: #{decoder_forward.1} parent=1 // pred_check_branch
      %15 = sbr.rel (0) target = $region9
    $region8: #{decoder_forward.1} parent=1 // pred_region
      _
    $region9: #{decoder_forward.1} parent=1 // pred_fallthru
      _
    // Predicated region
    $region10: #{decoder_forward.1} parent=1 // pred_check
      _
    $region11: #{decoder_forward.1} parent=1 // pred_check_branch
      %17 = sbr.rel (0) target = $region13
    $region12: #{decoder_forward.1} parent=1 // pred_region
      %s19 = ssub.s32 24576, 24576
      %20 = vsyncadd [#allocation3], %s19
      %s21 = sshll.u32 [#allocation2], 4
      %s22 = int_to_ptr.vmem [resolvable:$true] %s21
      %27 = dma.hbm_to_vmem [thread:$0]  %s2, 24576, %s22, [#allocation3], 128, 128, 8
    $region13: #{decoder_forward.1} parent=1 // pred_fallthru
      _
    // Predicated region
    $region14: #{decoder_forward.1} parent=1 // pred_check
      _
    $region15: #{decoder_forward.1} parent=1 // pred_check_branch
      %29 = sbr.rel (0) target = $region17
    $region16: #{decoder_forward.1} parent=1 // pred_region
      _
    $region17: #{decoder_forward.1} parent=1 // pred_fallthru
      _
    // Predicated region
    $region18: #{decoder_forward.1} parent=1 // pred_check
      _
    $region19: #{decoder_forward.1} parent=1 // pred_check_branch
      %31 = sbr.rel (0) target = $region21
    $region20: #{decoder_forward.1} parent=1 // pred_region
      _
    $region21: #{decoder_forward.1} parent=1 // pred_fallthru
      _
    // Predicated region
    $region22: #{decoder_forward.1} parent=1 // pred_check
      _
    $region23: #{decoder_forward.1} parent=1 // pred_check_branch
      %33 = sbr.rel (0) target = $region25
    $region24: #{decoder_forward.1} parent=1 // pred_region
      _
    $region25: #{decoder_forward.1} parent=1 // pred_fallthru
      _
    // Predicated region
    $region26: #{decoder_forward.1} parent=1 // pred_check
      _
    $region27: #{decoder_forward.1} parent=1 // pred_check_branch
      %35 = sbr.rel (0) target = $region29
    $region28: #{decoder_forward.1} parent=1 // pred_region
      %36 = dma.done [#allocation3], 24576
    $region29: #{decoder_forward.1} parent=1 // pred_fallthru
      _
    %v37 = vld [vmem:[%s0] sm:$0xff]
    %v38 = vld [vmem:[%s0 + $0x8] sm:$0xff]
    %v39 = vld [vmem:[%s0 + $0x10] sm:$0xff]
    %v40 = vld [vmem:[%s1] sm:$0xff]
    %v41 = vld [vmem:[%s1 + $0x8] sm:$0xff]
    %v42 = vld [vmem:[%s4] sm:$0xff]
    %v43 = vld [vmem:[%s4 + $0x8] sm:$0xff]
    %vm44 = vcmask 64512
    %v46 = vsel %vm44, %v37, 0
    %v49 = vsel %vm44, %v38, 0
    %v52 = vsel %vm44, %v39, 0
    %54 = vmatprep.subr.mxu0 0.0
    %55 = vmatpush1.msra.mxu0 0.0
    %56 = vmatprep.subr.mxu0 0.0
    %57 = vmatpush1.msra.mxu0 0.0
    %58 = vmatprep.subr.mxu0 0.0
    %59 = vmatpush1.msra.mxu0 0.0
    %60 = vmatprep.subr.mxu0 0.0
    %61 = vmatpush1.msra.mxu0 0.0
    %62 = vmatprep.subr.mxu0 0.0
    %63 = vmatpush1.msra.mxu0 0.0
    %64 = vmatprep.subr.mxu0 0.0
    %65 = vmatpush1.msra.mxu0 0.0
    %66 = vmatprep.subr.mxu0 0.0
    %67 = vmatpush1.msra.mxu0 0.0
    %68 = vmatprep.subr.mxu0 0.0
    %69 = vmatpush1.msra.mxu0 0.0
    %70 = vmatprep.subr.mxu0 0.0
    %71 = vmatpush1.msra.mxu0 0.0
    %72 = vmatprep.subr.mxu0 0.0
    %73 = vmatpush1.msra.mxu0 0.0
    %74 = vmatprep.subr.mxu0 0.0
    %75 = vmatpush1.msra.mxu0 0.0
    %76 = vmatprep.subr.mxu0 0.0
    %77 = vmatpush1.msra.mxu0 0.0
    %78 = vmatprep.subr.mxu0 0.0
    %79 = vmatpush1.msra.mxu0 0.0
    %80 = vmatprep.subr.mxu0 0.0
    %81 = vmatpush1.msra.mxu0 0.0
    %82 = vmatprep.subr.mxu0 0.0
    %83 = vmatpush1.msra.mxu0 0.0
    %84 = vmatprep.subr.mxu0 %v42
    %85 = vmatpush1.msra.mxu0 %v40
    %86 = vmatprep.subr.mxu0 0.0
    %87 = vmatpush2.msra.mxu0 0.0
    %88 = vmatprep.subr.mxu0 0.0
    %89 = vmatpush2.msra.mxu0 0.0
    %90 = vmatprep.subr.mxu0 0.0
    %91 = vmatpush2.msra.mxu0 0.0
    %92 = vmatprep.subr.mxu0 0.0
    %93 = vmatpush2.msra.mxu0 0.0
    %94 = vmatprep.subr.mxu0 0.0
    %95 = vmatpush2.msra.mxu0 0.0
    %96 = vmatprep.subr.mxu0 0.0
    %97 = vmatpush2.msra.mxu0 0.0
    %98 = vmatprep.subr.mxu0 0.0
    %99 = vmatpush2.msra.mxu0 0.0
    %100 = vmatprep.subr.mxu0 0.0
    %101 = vmatpush2.msra.mxu0 0.0
    %102 = vmatprep.subr.mxu0 0.0
    %103 = vmatpush2.msra.mxu0 0.0
    %104 = vmatprep.subr.mxu0 0.0
    %105 = vmatpush2.msra.mxu0 0.0
    %106 = vmatprep.subr.mxu0 0.0
    %107 = vmatpush2.msra.mxu0 0.0
    %108 = vmatprep.subr.mxu0 0.0
    %109 = vmatpush2.msra.mxu0 0.0
    %110 = vmatprep.subr.mxu0 0.0
    %111 = vmatpush2.msra.mxu0 0.0
    %112 = vmatprep.subr.mxu0 0.0
    %113 = vmatpush2.msra.mxu0 0.0
    %114 = vmatprep.subr.mxu0 0.0
    %115 = vmatpush2.msra.mxu0 0.0
    %116 = vmatprep.subr.mxu0 0.0
    %117 = vmatpush2.msra.mxu0 0.0
    %118 = vmatprep.mubr.f32.mxu0 0.0
    %119 = vmatmul.mubr.f32.gmra.mxu0 %v46
    %v120 = vpop.f32.mrf.mxu0
    %v121 = vadd.f32 0.0, %v120
    %v122 = vpop.f32.mrf.mxu0
    %v123 = vadd.f32 0.0, %v122
    %124 = vmatprep.mubr.f32.mxu0 0.0
    %125 = vmatmul.mubr.f32.gmra.mxu0 %v49
    %v126 = vpop.f32.mrf.mxu0
    %v127 = vadd.f32 0.0, %v126
    %v128 = vpop.f32.mrf.mxu0
    %v129 = vadd.f32 0.0, %v128
    %130 = vmatprep.mubr.f32.mxu0 0.0
    %131 = vmatmul.mubr.f32.gmra.mxu0 %v52
    %v132 = vpop.f32.mrf.mxu0
    %v133 = vadd.f32 0.0, %v132
    %v134 = vpop.f32.mrf.mxu0
    %v135 = vadd.f32 0.0, %v134
    %136 = vdwg.mxu0
    %137 = vmatprep.subr.mxu0 0.0
    %138 = vmatpush1.msra.mxu0 0.0
    %139 = vmatprep.subr.mxu0 0.0
    %140 = vmatpush1.msra.mxu0 0.0
    %141 = vmatprep.subr.mxu0 0.0
    %142 = vmatpush1.msra.mxu0 0.0
    %143 = vmatprep.subr.mxu0 0.0
    %144 = vmatpush1.msra.mxu0 0.0
    %145 = vmatprep.subr.mxu0 0.0
    %146 = vmatpush1.msra.mxu0 0.0
    %147 = vmatprep.subr.mxu0 0.0
    %148 = vmatpush1.msra.mxu0 0.0
    %149 = vmatprep.subr.mxu0 0.0
    %150 = vmatpush1.msra.mxu0 0.0
    %151 = vmatprep.subr.mxu0 0.0
    %152 = vmatpush1.msra.mxu0 0.0
    %153 = vmatprep.subr.mxu0 0.0
    %154 = vmatpush1.msra.mxu0 0.0
    %155 = vmatprep.subr.mxu0 0.0
    %156 = vmatpush1.msra.mxu0 0.0
    %157 = vmatprep.subr.mxu0 0.0
    %158 = vmatpush1.msra.mxu0 0.0
    %159 = vmatprep.subr.mxu0 0.0
    %160 = vmatpush1.msra.mxu0 0.0
    %161 = vmatprep.subr.mxu0 0.0
    %162 = vmatpush1.msra.mxu0 0.0
    %163 = vmatprep.subr.mxu0 0.0
    %164 = vmatpush1.msra.mxu0 0.0
    %165 = vmatprep.subr.mxu0 0.0
    %166 = vmatpush1.msra.mxu0 0.0
    %167 = vmatprep.subr.mxu0 %v43
    %168 = vmatpush1.msra.mxu0 %v41
    %169 = vmatprep.subr.mxu0 0.0
    %170 = vmatpush2.msra.mxu0 0.0
    %171 = vmatprep.subr.mxu0 0.0
    %172 = vmatpush2.msra.mxu0 0.0
    %173 = vmatprep.subr.mxu0 0.0
    %174 = vmatpush2.msra.mxu0 0.0
    %175 = vmatprep.subr.mxu0 0.0
    %176 = vmatpush2.msra.mxu0 0.0
    %177 = vmatprep.subr.mxu0 0.0
    %178 = vmatpush2.msra.mxu0 0.0
    %179 = vmatprep.subr.mxu0 0.0
    %180 = vmatpush2.msra.mxu0 0.0
    %181 = vmatprep.subr.mxu0 0.0
    %182 = vmatpush2.msra.mxu0 0.0
    %183 = vmatprep.subr.mxu0 0.0
    %184 = vmatpush2.msra.mxu0 0.0
    %185 = vmatprep.subr.mxu0 0.0
    %186 = vmatpush2.msra.mxu0 0.0
    %187 = vmatprep.subr.mxu0 0.0
    %188 = vmatpush2.msra.mxu0 0.0
    %189 = vmatprep.subr.mxu0 0.0
    %190 = vmatpush2.msra.mxu0 0.0
    %191 = vmatprep.subr.mxu0 0.0
    %192 = vmatpush2.msra.mxu0 0.0
    %193 = vmatprep.subr.mxu0 0.0
    %194 = vmatpush2.msra.mxu0 0.0
    %195 = vmatprep.subr.mxu0 0.0
    %196 = vmatpush2.msra.mxu0 0.0
    %197 = vmatprep.subr.mxu0 0.0
    %198 = vmatpush2.msra.mxu0 0.0
    %199 = vmatprep.subr.mxu0 0.0
    %200 = vmatpush2.msra.mxu0 0.0
    %201 = vmatprep.mubr.f32.mxu0 0.0
    %202 = vmatmul.mubr.f32.gmra.mxu0 %v46
    %v203 = vpop.f32.mrf.mxu0
    %v204 = vadd.f32 0.0, %v203
    %v205 = vpop.f32.mrf.mxu0
    %v206 = vadd.f32 0.0, %v205
    %207 = vmatprep.mubr.f32.mxu0 0.0
    %208 = vmatmul.mubr.f32.gmra.mxu0 %v49
    %v209 = vpop.f32.mrf.mxu0
    %v210 = vadd.f32 0.0, %v209
    %v211 = vpop.f32.mrf.mxu0
    %v212 = vadd.f32 0.0, %v211
    %213 = vmatprep.mubr.f32.mxu0 0.0
    %214 = vmatmul.mubr.f32.gmra.mxu0 %v52
    %v215 = vpop.f32.mrf.mxu0
    %v216 = vadd.f32 0.0, %v215
    %v217 = vpop.f32.mrf.mxu0
    %v218 = vadd.f32 0.0, %v217
    %219 = vdwg.mxu0
    %v220 = vld [vmem:[#allocation2] sm:$0xff]
    %v221 = vld [vmem:[#allocation2 + $0x8] sm:$0xff]
    %v222 = vld [vmem:[#allocation2 + $0x10] sm:$0xff]
    %v223 = vld [vmem:[#allocation2 + $0x18] sm:$0xff]
    %v224 = vld [vmem:[#allocation2 + $0x20] sm:$0xff]
    %v225 = vld [vmem:[#allocation2 + $0x28] sm:$0xff]
    %v226 = vld [vmem:[#allocation2 + $0x30] sm:$0xff]
    %v227 = vld [vmem:[#allocation2 + $0x38] sm:$0xff]
    %v228 = vld [vmem:[#allocation2 + $0x40] sm:$0xff]
    %v229 = vld [vmem:[#allocation2 + $0x48] sm:$0xff]
    %v230 = vld [vmem:[#allocation2 + $0x50] sm:$0xff]
    %v231 = vld [vmem:[#allocation2 + $0x58] sm:$0xff]
    %v232 = vld [vmem:[#allocation2 + $0x60] sm:$0xff]
    %v233 = vld [vmem:[#allocation2 + $0x68] sm:$0xff]
    %v234 = vld [vmem:[#allocation2 + $0x70] sm:$0xff]
    %v235 = vld [vmem:[#allocation2 + $0x78] sm:$0xff]
    %v236 = vld [vmem:[#allocation2 + $0x80] sm:$0xff]
    %v237 = vld [vmem:[#allocation2 + $0x88] sm:$0xff]
    %v238 = vld [vmem:[#allocation2 + $0x90] sm:$0xff]
    %v239 = vld [vmem:[#allocation2 + $0x98] sm:$0xff]
    %v240 = vld [vmem:[#allocation2 + $0xa0] sm:$0xff]
    %v241 = vld [vmem:[#allocation2 + $0xa8] sm:$0xff]
    %v242 = vld [vmem:[#allocation2 + $0xb0] sm:$0xff]
    %v243 = vld [vmem:[#allocation2 + $0xb8] sm:$0xff]
    %v244 = vld [vmem:[#allocation2 + $0xc0] sm:$0xff]
    %v245 = vld [vmem:[#allocation2 + $0xc8] sm:$0xff]
    %v246 = vld [vmem:[#allocation2 + $0xd0] sm:$0xff]
    %v247 = vld [vmem:[#allocation2 + $0xd8] sm:$0xff]
    %v248 = vld [vmem:[#allocation2 + $0xe0] sm:$0xff]
    %v249 = vld [vmem:[#allocation2 + $0xe8] sm:$0xff]
    %v250 = vld [vmem:[#allocation2 + $0xf0] sm:$0xff]
    %v251 = vld [vmem:[#allocation2 + $0xf8] sm:$0xff]
    %v252 = vld [vmem:[#allocation2 + $0x100] sm:$0xff]
    %v253 = vld [vmem:[#allocation2 + $0x108] sm:$0xff]
    %v254 = vld [vmem:[#allocation2 + $0x110] sm:$0xff]
    %v255 = vld [vmem:[#allocation2 + $0x118] sm:$0xff]
    %v256 = vld [vmem:[#allocation2 + $0x120] sm:$0xff]
    %v257 = vld [vmem:[#allocation2 + $0x128] sm:$0xff]
    %v258 = vld [vmem:[#allocation2 + $0x130] sm:$0xff]
    %v259 = vld [vmem:[#allocation2 + $0x138] sm:$0xff]
    %v260 = vld [vmem:[#allocation2 + $0x140] sm:$0xff]
    %v261 = vld [vmem:[#allocation2 + $0x148] sm:$0xff]
    %v262 = vld [vmem:[#allocation2 + $0x150] sm:$0xff]
    %v263 = vld [vmem:[#allocation2 + $0x158] sm:$0xff]
    %v264 = vld [vmem:[#allocation2 + $0x160] sm:$0xff]
    %v265 = vld [vmem:[#allocation2 + $0x168] sm:$0xff]
    %v266 = vld [vmem:[#allocation2 + $0x170] sm:$0xff]
    %v267 = vld [vmem:[#allocation2 + $0x178] sm:$0xff]
    %v268 = vld [vmem:[#allocation2 + $0x180] sm:$0xff]
    %v269 = vld [vmem:[#allocation2 + $0x188] sm:$0xff]
    %v270 = vld [vmem:[#allocation2 + $0x190] sm:$0xff]
    %v271 = vld [vmem:[#allocation2 + $0x198] sm:$0xff]
    %v272 = vld [vmem:[#allocation2 + $0x1a0] sm:$0xff]
    %v273 = vld [vmem:[#allocation2 + $0x1a8] sm:$0xff]
    %v274 = vld [vmem:[#allocation2 + $0x1b0] sm:$0xff]
    %v275 = vld [vmem:[#allocation2 + $0x1b8] sm:$0xff]
    %v276 = vld [vmem:[#allocation2 + $0x1c0] sm:$0xff]
    %v277 = vld [vmem:[#allocation2 + $0x1c8] sm:$0xff]
    %v278 = vld [vmem:[#allocation2 + $0x1d0] sm:$0xff]
    %v279 = vld [vmem:[#allocation2 + $0x1d8] sm:$0xff]
    %v280 = vld [vmem:[#allocation2 + $0x1e0] sm:$0xff]
    %v281 = vld [vmem:[#allocation2 + $0x1e8] sm:$0xff]
    %v282 = vld [vmem:[#allocation2 + $0x1f0] sm:$0xff]
    %v283 = vld [vmem:[#allocation2 + $0x1f8] sm:$0xff]
    %v284 = vld [vmem:[#allocation2 + $0x200] sm:$0xff]
    %v285 = vld [vmem:[#allocation2 + $0x208] sm:$0xff]
    %v286 = vld [vmem:[#allocation2 + $0x210] sm:$0xff]
    %v287 = vld [vmem:[#allocation2 + $0x218] sm:$0xff]
    %v288 = vld [vmem:[#allocation2 + $0x220] sm:$0xff]
    %v289 = vld [vmem:[#allocation2 + $0x228] sm:$0xff]
    %v290 = vld [vmem:[#allocation2 + $0x230] sm:$0xff]
    %v291 = vld [vmem:[#allocation2 + $0x238] sm:$0xff]
    %v292 = vld [vmem:[#allocation2 + $0x240] sm:$0xff]
    %v293 = vld [vmem:[#allocation2 + $0x248] sm:$0xff]
    %v294 = vld [vmem:[#allocation2 + $0x250] sm:$0xff]
    %v295 = vld [vmem:[#allocation2 + $0x258] sm:$0xff]
    %v296 = vld [vmem:[#allocation2 + $0x260] sm:$0xff]
    %v297 = vld [vmem:[#allocation2 + $0x268] sm:$0xff]
    %v298 = vld [vmem:[#allocation2 + $0x270] sm:$0xff]
    %v299 = vld [vmem:[#allocation2 + $0x278] sm:$0xff]
    %v300 = vld [vmem:[#allocation2 + $0x280] sm:$0xff]
    %v301 = vld [vmem:[#allocation2 + $0x288] sm:$0xff]
    %v302 = vld [vmem:[#allocation2 + $0x290] sm:$0xff]
    %v303 = vld [vmem:[#allocation2 + $0x298] sm:$0xff]
    %v304 = vld [vmem:[#allocation2 + $0x2a0] sm:$0xff]
    %v305 = vld [vmem:[#allocation2 + $0x2a8] sm:$0xff]
    %v306 = vld [vmem:[#allocation2 + $0x2b0] sm:$0xff]
    %v307 = vld [vmem:[#allocation2 + $0x2b8] sm:$0xff]
    %v308 = vld [vmem:[#allocation2 + $0x2c0] sm:$0xff]
    %v309 = vld [vmem:[#allocation2 + $0x2c8] sm:$0xff]
    %v310 = vld [vmem:[#allocation2 + $0x2d0] sm:$0xff]
    %v311 = vld [vmem:[#allocation2 + $0x2d8] sm:$0xff]
    %v312 = vld [vmem:[#allocation2 + $0x2e0] sm:$0xff]
    %v313 = vld [vmem:[#allocation2 + $0x2e8] sm:$0xff]
    %v314 = vld [vmem:[#allocation2 + $0x2f0] sm:$0xff]
    %v315 = vld [vmem:[#allocation2 + $0x2f8] sm:$0xff]
    %v316 = vld [vmem:[%s3] sm:$0x1]
    %v318 = vlaneseq
    %v319 = vshrl.u32 %v318, 7
    %v320 = vsub.s32 0, %v319
    %v321 = vrot.slane %v316, %v320
    %323 = vmatprep.subr.mxu0 0.0
    %324 = vmatpush1.msra.mxu0 %v235
    %325 = vmatprep.subr.mxu0 0.0
    %326 = vmatpush1.msra.mxu0 %v234
    %327 = vmatprep.subr.mxu0 0.0
    %328 = vmatpush1.msra.mxu0 %v233
    %329 = vmatprep.subr.mxu0 0.0
    %330 = vmatpush1.msra.mxu0 %v232
    %331 = vmatprep.subr.mxu0 0.0
    %332 = vmatpush1.msra.mxu0 %v231
    %333 = vmatprep.subr.mxu0 0.0
    %334 = vmatpush1.msra.mxu0 %v230
    %335 = vmatprep.subr.mxu0 0.0
    %336 = vmatpush1.msra.mxu0 %v229
    %337 = vmatprep.subr.mxu0 0.0
    %338 = vmatpush1.msra.mxu0 %v228
    %339 = vmatprep.subr.mxu0 0.0
    %340 = vmatpush1.msra.mxu0 %v227
    %341 = vmatprep.subr.mxu0 0.0
    %342 = vmatpush1.msra.mxu0 %v226
    %343 = vmatprep.subr.mxu0 0.0
    %344 = vmatpush1.msra.mxu0 %v225
    %345 = vmatprep.subr.mxu0 0.0
    %346 = vmatpush1.msra.mxu0 %v224
    %347 = vmatprep.subr.mxu0 0.0
    %348 = vmatpush1.msra.mxu0 %v223
    %349 = vmatprep.subr.mxu0 0.0
    %350 = vmatpush1.msra.mxu0 %v222
    %351 = vmatprep.subr.mxu0 0.0
    %352 = vmatpush1.msra.mxu0 %v221
    %353 = vmatprep.subr.mxu0 0.0
    %354 = vmatpush1.msra.mxu0 %v220
    %355 = vmatprep.subr.mxu0 0.0
    %356 = vmatpush2.msra.mxu0 %v251
    %357 = vmatprep.subr.mxu0 0.0
    %358 = vmatpush2.msra.mxu0 %v250
    %359 = vmatprep.subr.mxu0 0.0
    %360 = vmatpush2.msra.mxu0 %v249
    %361 = vmatprep.subr.mxu0 0.0
    %362 = vmatpush2.msra.mxu0 %v248
    %363 = vmatprep.subr.mxu0 0.0
    %364 = vmatpush2.msra.mxu0 %v247
    %365 = vmatprep.subr.mxu0 0.0
    %366 = vmatpush2.msra.mxu0 %v246
    %367 = vmatprep.subr.mxu0 0.0
    %368 = vmatpush2.msra.mxu0 %v245
    %369 = vmatprep.subr.mxu0 0.0
    %370 = vmatpush2.msra.mxu0 %v244
    %371 = vmatprep.subr.mxu0 0.0
    %372 = vmatpush2.msra.mxu0 %v243
    %373 = vmatprep.subr.mxu0 0.0
    %374 = vmatpush2.msra.mxu0 %v242
    %375 = vmatprep.subr.mxu0 0.0
    %376 = vmatpush2.msra.mxu0 %v241
    %377 = vmatprep.subr.mxu0 0.0
    %378 = vmatpush2.msra.mxu0 %v240
    %379 = vmatprep.subr.mxu0 0.0
    %380 = vmatpush2.msra.mxu0 %v239
    %381 = vmatprep.subr.mxu0 0.0
    %382 = vmatpush2.msra.mxu0 %v238
    %383 = vmatprep.subr.mxu0 0.0
    %384 = vmatpush2.msra.mxu0 %v237
    %385 = vmatprep.subr.mxu0 0.0
    %386 = vmatpush2.msra.mxu0 %v236
    %387 = vmatprep.mubr.f32.mxu0 %v123
    %388 = vmatmul.mubr.f32.gmra.mxu0 %v121
    %v389 = vpop.f32.mrf.mxu0
    %v390 = vadd.f32 %v321, %v389
    %v391 = vpop.f32.mrf.mxu0
    %392 = vmatprep.mubr.f32.mxu0 %v206
    %393 = vmatmul.mubr.f32.gmra.mxu0 %v204
    %v394 = vpop.f32.mrf.mxu0
    %v395 = vadd.f32 %v321, %v394
    %v396 = vpop.f32.mrf.mxu0
    %397 = vdwg.mxu0
    %398 = vmatprep.subr.mxu0 0.0
    %399 = vmatpush1.msra.mxu0 %v267
    %400 = vmatprep.subr.mxu0 0.0
    %401 = vmatpush1.msra.mxu0 %v266
    %402 = vmatprep.subr.mxu0 0.0
    %403 = vmatpush1.msra.mxu0 %v265
    %404 = vmatprep.subr.mxu0 0.0
    %405 = vmatpush1.msra.mxu0 %v264
    %406 = vmatprep.subr.mxu0 0.0
    %407 = vmatpush1.msra.mxu0 %v263
    %408 = vmatprep.subr.mxu0 0.0
    %409 = vmatpush1.msra.mxu0 %v262
    %410 = vmatprep.subr.mxu0 0.0
    %411 = vmatpush1.msra.mxu0 %v261
    %412 = vmatprep.subr.mxu0 0.0
    %413 = vmatpush1.msra.mxu0 %v260
    %414 = vmatprep.subr.mxu0 0.0
    %415 = vmatpush1.msra.mxu0 %v259
    %416 = vmatprep.subr.mxu0 0.0
    %417 = vmatpush1.msra.mxu0 %v258
    %418 = vmatprep.subr.mxu0 0.0
    %419 = vmatpush1.msra.mxu0 %v257
    %420 = vmatprep.subr.mxu0 0.0
    %421 = vmatpush1.msra.mxu0 %v256
    %422 = vmatprep.subr.mxu0 0.0
    %423 = vmatpush1.msra.mxu0 %v255
    %424 = vmatprep.subr.mxu0 0.0
    %425 = vmatpush1.msra.mxu0 %v254
    %426 = vmatprep.subr.mxu0 0.0
    %427 = vmatpush1.msra.mxu0 %v253
    %428 = vmatprep.subr.mxu0 0.0
    %429 = vmatpush1.msra.mxu0 %v252
    %430 = vmatprep.subr.mxu0 0.0
    %431 = vmatpush2.msra.mxu0 %v283
    %432 = vmatprep.subr.mxu0 0.0
    %433 = vmatpush2.msra.mxu0 %v282
    %434 = vmatprep.subr.mxu0 0.0
    %435 = vmatpush2.msra.mxu0 %v281
    %436 = vmatprep.subr.mxu0 0.0
    %437 = vmatpush2.msra.mxu0 %v280
    %438 = vmatprep.subr.mxu0 0.0
    %439 = vmatpush2.msra.mxu0 %v279
    %440 = vmatprep.subr.mxu0 0.0
    %441 = vmatpush2.msra.mxu0 %v278
    %442 = vmatprep.subr.mxu0 0.0
    %443 = vmatpush2.msra.mxu0 %v277
    %444 = vmatprep.subr.mxu0 0.0
    %445 = vmatpush2.msra.mxu0 %v276
    %446 = vmatprep.subr.mxu0 0.0
    %447 = vmatpush2.msra.mxu0 %v275
    %448 = vmatprep.subr.mxu0 0.0
    %449 = vmatpush2.msra.mxu0 %v274
    %450 = vmatprep.subr.mxu0 0.0
    %451 = vmatpush2.msra.mxu0 %v273
    %452 = vmatprep.subr.mxu0 0.0
    %453 = vmatpush2.msra.mxu0 %v272
    %454 = vmatprep.subr.mxu0 0.0
    %455 = vmatpush2.msra.mxu0 %v271
    %456 = vmatprep.subr.mxu0 0.0
    %457 = vmatpush2.msra.mxu0 %v270
    %458 = vmatprep.subr.mxu0 0.0
    %459 = vmatpush2.msra.mxu0 %v269
    %460 = vmatprep.subr.mxu0 0.0
    %461 = vmatpush2.msra.mxu0 %v268
    %462 = vmatprep.mubr.f32.mxu0 %v129
    %463 = vmatmul.mubr.f32.gmra.mxu0 %v127
    %v464 = vpop.f32.mrf.mxu0
    %v465 = vadd.f32 %v390, %v464
    %v466 = vpop.f32.mrf.mxu0
    %467 = vmatprep.mubr.f32.mxu0 %v212
    %468 = vmatmul.mubr.f32.gmra.mxu0 %v210
    %v469 = vpop.f32.mrf.mxu0
    %v470 = vadd.f32 %v395, %v469
    %v471 = vpop.f32.mrf.mxu0
    %472 = vdwg.mxu0
    %473 = vmatprep.subr.mxu0 0.0
    %474 = vmatpush1.msra.mxu0 %v299
    %475 = vmatprep.subr.mxu0 0.0
    %476 = vmatpush1.msra.mxu0 %v298
    %477 = vmatprep.subr.mxu0 0.0
    %478 = vmatpush1.msra.mxu0 %v297
    %479 = vmatprep.subr.mxu0 0.0
    %480 = vmatpush1.msra.mxu0 %v296
    %481 = vmatprep.subr.mxu0 0.0
    %482 = vmatpush1.msra.mxu0 %v295
    %483 = vmatprep.subr.mxu0 0.0
    %484 = vmatpush1.msra.mxu0 %v294
    %485 = vmatprep.subr.mxu0 0.0
    %486 = vmatpush1.msra.mxu0 %v293
    %487 = vmatprep.subr.mxu0 0.0
    %488 = vmatpush1.msra.mxu0 %v292
    %489 = vmatprep.subr.mxu0 0.0
    %490 = vmatpush1.msra.mxu0 %v291
    %491 = vmatprep.subr.mxu0 0.0
    %492 = vmatpush1.msra.mxu0 %v290
    %493 = vmatprep.subr.mxu0 0.0
    %494 = vmatpush1.msra.mxu0 %v289
    %495 = vmatprep.subr.mxu0 0.0
    %496 = vmatpush1.msra.mxu0 %v288
    %497 = vmatprep.subr.mxu0 0.0
    %498 = vmatpush1.msra.mxu0 %v287
    %499 = vmatprep.subr.mxu0 0.0
    %500 = vmatpush1.msra.mxu0 %v286
    %501 = vmatprep.subr.mxu0 0.0
    %502 = vmatpush1.msra.mxu0 %v285
    %503 = vmatprep.subr.mxu0 0.0
    %504 = vmatpush1.msra.mxu0 %v284
    %505 = vmatprep.subr.mxu0 0.0
    %506 = vmatpush2.msra.mxu0 %v315
    %507 = vmatprep.subr.mxu0 0.0
    %508 = vmatpush2.msra.mxu0 %v314
    %509 = vmatprep.subr.mxu0 0.0
    %510 = vmatpush2.msra.mxu0 %v313
    %511 = vmatprep.subr.mxu0 0.0
    %512 = vmatpush2.msra.mxu0 %v312
    %513 = vmatprep.subr.mxu0 0.0
    %514 = vmatpush2.msra.mxu0 %v311
    %515 = vmatprep.subr.mxu0 0.0
    %516 = vmatpush2.msra.mxu0 %v310
    %517 = vmatprep.subr.mxu0 0.0
    %518 = vmatpush2.msra.mxu0 %v309
    %519 = vmatprep.subr.mxu0 0.0
    %520 = vmatpush2.msra.mxu0 %v308
    %521 = vmatprep.subr.mxu0 0.0
    %522 = vmatpush2.msra.mxu0 %v307
    %523 = vmatprep.subr.mxu0 0.0
    %524 = vmatpush2.msra.mxu0 %v306
    %525 = vmatprep.subr.mxu0 0.0
    %526 = vmatpush2.msra.mxu0 %v305
    %527 = vmatprep.subr.mxu0 0.0
    %528 = vmatpush2.msra.mxu0 %v304
    %529 = vmatprep.subr.mxu0 0.0
    %530 = vmatpush2.msra.mxu0 %v303
    %531 = vmatprep.subr.mxu0 0.0
    %532 = vmatpush2.msra.mxu0 %v302
    %533 = vmatprep.subr.mxu0 0.0
    %534 = vmatpush2.msra.mxu0 %v301
    %535 = vmatprep.subr.mxu0 0.0
    %536 = vmatpush2.msra.mxu0 %v300
    %537 = vmatprep.mubr.f32.mxu0 %v135
    %538 = vmatmul.mubr.f32.gmra.mxu0 %v133
    %v539 = vpop.f32.mrf.mxu0
    %v540 = vadd.f32 %v465, %v539
    %v541 = vpop.f32.mrf.mxu0
    %542 = vmatprep.mubr.f32.mxu0 %v218
    %543 = vmatmul.mubr.f32.gmra.mxu0 %v216
    %v544 = vpop.f32.mrf.mxu0
    %v545 = vadd.f32 %v470, %v544
    %v546 = vpop.f32.mrf.mxu0
    %547 = vdwg.mxu0
    %v548 = vxor.u32 %v540, 2147483648
    %v549 = vxor.u32 %v545, 2147483648
    %v550 = vmul.f32 %v548, 1.442695
    %v551 = vpow.pop %v550
    %v552 = vmul.f32 %v549, 1.442695
    %v553 = vpow.pop %v552
    %v554 = vadd.f32 %v551, 1.0
    %v555 = vadd.f32 %v553, 1.0
    %v556 = vrcp.pop %v554
    %v557 = vmul.f32 1.0, %v556
    %v558 = vrcp.pop %v555
    %v559 = vmul.f32 1.0, %v558
    %v560 = vtanh.pop %v540
    %v561 = vtanh.pop %v545
    %v562 = vld [vmem:[%s5] sm:$0xff]
    %v563 = vld [vmem:[%s5 + $0x8] sm:$0xff]
    %566 = vrot.lane.b32.xlu0 %v562, 32
    %v567 = vpop.permute.xlu0 %566
    %568 = vrot.lane.b32.xlu0 %v563, 32
    %v569 = vpop.permute.xlu0 %568
    %v572 = vmul.f32 %v557, %v567
    %v573 = vmul.f32 %v559, %v569
    %576 = vrot.lane.b32.xlu0 %v560, 32
    %v577 = vpop.permute.xlu0 %576
    %578 = vrot.lane.b32.xlu0 %v561, 32
    %v579 = vpop.permute.xlu0 %578
    %v582 = vmul.f32 %v557, %v577
    %v583 = vmul.f32 %v559, %v579
    %586 = vrot.lane.b32.xlu0 %v582, 32
    %v587 = vpop.permute.xlu0 %586
    %588 = vrot.lane.b32.xlu0 %v583, 32
    %v589 = vpop.permute.xlu0 %588
    %v592 = vadd.f32 %v572, %v587
    %v593 = vadd.f32 %v573, %v589
    %v594 = vtanh.pop %v592
    %v595 = vtanh.pop %v593
    %598 = vrot.lane.b32.xlu0 %v594, 32
    %v599 = vpop.permute.xlu0 %598
    %600 = vrot.lane.b32.xlu0 %v595, 32
    %v601 = vpop.permute.xlu0 %600
    %v604 = vmul.f32 %v557, %v599
    %v605 = vmul.f32 %v559, %v601
    %608 = vrot.lane.b32.xlu0 %v604, 64
    %v609 = vpop.permute.xlu0 %608
    %610 = vrot.lane.b32.xlu0 %v605, 64
    %v611 = vpop.permute.xlu0 %610
    %vm614 = vcmask 261120
    %v615 = vsel %vm614, %v609, 0.0
    %v616 = vsel %vm614, %v611, 0.0
    %s617 = scalar_lea.vmem %s4, 16
    %v618 = vld [vmem:[%s617] sm:$0xff]
    %v619 = vld [vmem:[%s617 + $0x8] sm:$0xff]
    %620 = vmatprep.subr.mxu0 0.0
    %621 = vmatpush1.msra.mxu0 0.0
    %622 = vmatprep.subr.mxu0 0.0
    %623 = vmatpush1.msra.mxu0 0.0
    %624 = vmatprep.subr.mxu0 0.0
    %625 = vmatpush1.msra.mxu0 0.0
    %626 = vmatprep.subr.mxu0 0.0
    %627 = vmatpush1.msra.mxu0 0.0
    %628 = vmatprep.subr.mxu0 0.0
    %629 = vmatpush1.msra.mxu0 0.0
    %630 = vmatprep.subr.mxu0 0.0
    %631 = vmatpush1.msra.mxu0 0.0
    %632 = vmatprep.subr.mxu0 0.0
    %633 = vmatpush1.msra.mxu0 0.0
    %634 = vmatprep.subr.mxu0 0.0
    %635 = vmatpush1.msra.mxu0 0.0
    %636 = vmatprep.subr.mxu0 0.0
    %637 = vmatpush1.msra.mxu0 0.0
    %638 = vmatprep.subr.mxu0 0.0
    %639 = vmatpush1.msra.mxu0 0.0
    %640 = vmatprep.subr.mxu0 0.0
    %641 = vmatpush1.msra.mxu0 0.0
    %642 = vmatprep.subr.mxu0 0.0
    %643 = vmatpush1.msra.mxu0 0.0
    %644 = vmatprep.subr.mxu0 0.0
    %645 = vmatpush1.msra.mxu0 0.0
    %646 = vmatprep.subr.mxu0 0.0
    %647 = vmatpush1.msra.mxu0 0.0
    %648 = vmatprep.subr.mxu0 0.0
    %649 = vmatpush1.msra.mxu0 0.0
    %650 = vmatprep.subr.mxu0 %v618
    %651 = vmatpush1.msra.mxu0 %v615
    %652 = vmatprep.subr.mxu0 0.0
    %653 = vmatpush2.msra.mxu0 0.0
    %654 = vmatprep.subr.mxu0 0.0
    %655 = vmatpush2.msra.mxu0 0.0
    %656 = vmatprep.subr.mxu0 0.0
    %657 = vmatpush2.msra.mxu0 0.0
    %658 = vmatprep.subr.mxu0 0.0
    %659 = vmatpush2.msra.mxu0 0.0
    %660 = vmatprep.subr.mxu0 0.0
    %661 = vmatpush2.msra.mxu0 0.0
    %662 = vmatprep.subr.mxu0 0.0
    %663 = vmatpush2.msra.mxu0 0.0
    %664 = vmatprep.subr.mxu0 0.0
    %665 = vmatpush2.msra.mxu0 0.0
    %666 = vmatprep.subr.mxu0 0.0
    %667 = vmatpush2.msra.mxu0 0.0
    %668 = vmatprep.subr.mxu0 0.0
    %669 = vmatpush2.msra.mxu0 0.0
    %670 = vmatprep.subr.mxu0 0.0
    %671 = vmatpush2.msra.mxu0 0.0
    %672 = vmatprep.subr.mxu0 0.0
    %673 = vmatpush2.msra.mxu0 0.0
    %674 = vmatprep.subr.mxu0 0.0
    %675 = vmatpush2.msra.mxu0 0.0
    %676 = vmatprep.subr.mxu0 0.0
    %677 = vmatpush2.msra.mxu0 0.0
    %678 = vmatprep.subr.mxu0 0.0
    %679 = vmatpush2.msra.mxu0 0.0
    %680 = vmatprep.subr.mxu0 0.0
    %681 = vmatpush2.msra.mxu0 0.0
    %682 = vmatprep.subr.mxu0 0.0
    %683 = vmatpush2.msra.mxu0 0.0
    %684 = vmatprep.mubr.f32.mxu0 0.0
    %685 = vmatmul.mubr.f32.gmra.mxu0 %v46
    %v686 = vpop.f32.mrf.mxu0
    %v687 = vadd.f32 0.0, %v686
    %v688 = vpop.f32.mrf.mxu0
    %v689 = vadd.f32 0.0, %v688
    %690 = vmatprep.mubr.f32.mxu0 0.0
    %691 = vmatmul.mubr.f32.gmra.mxu0 %v49
    %v692 = vpop.f32.mrf.mxu0
    %v693 = vadd.f32 0.0, %v692
    %v694 = vpop.f32.mrf.mxu0
    %v695 = vadd.f32 0.0, %v694
    %696 = vmatprep.mubr.f32.mxu0 0.0
    %697 = vmatmul.mubr.f32.gmra.mxu0 %v52
    %v698 = vpop.f32.mrf.mxu0
    %v699 = vadd.f32 0.0, %v698
    %v700 = vpop.f32.mrf.mxu0
    %v701 = vadd.f32 0.0, %v700
    %702 = vdwg.mxu0
    %703 = vmatprep.subr.mxu0 0.0
    %704 = vmatpush1.msra.mxu0 0.0
    %705 = vmatprep.subr.mxu0 0.0
    %706 = vmatpush1.msra.mxu0 0.0
    %707 = vmatprep.subr.mxu0 0.0
    %708 = vmatpush1.msra.mxu0 0.0
    %709 = vmatprep.subr.mxu0 0.0
    %710 = vmatpush1.msra.mxu0 0.0
    %711 = vmatprep.subr.mxu0 0.0
    %712 = vmatpush1.msra.mxu0 0.0
    %713 = vmatprep.subr.mxu0 0.0
    %714 = vmatpush1.msra.mxu0 0.0
    %715 = vmatprep.subr.mxu0 0.0
    %716 = vmatpush1.msra.mxu0 0.0
    %717 = vmatprep.subr.mxu0 0.0
    %718 = vmatpush1.msra.mxu0 0.0
    %719 = vmatprep.subr.mxu0 0.0
    %720 = vmatpush1.msra.mxu0 0.0
    %721 = vmatprep.subr.mxu0 0.0
    %722 = vmatpush1.msra.mxu0 0.0
    %723 = vmatprep.subr.mxu0 0.0
    %724 = vmatpush1.msra.mxu0 0.0
    %725 = vmatprep.subr.mxu0 0.0
    %726 = vmatpush1.msra.mxu0 0.0
    %727 = vmatprep.subr.mxu0 0.0
    %728 = vmatpush1.msra.mxu0 0.0
    %729 = vmatprep.subr.mxu0 0.0
    %730 = vmatpush1.msra.mxu0 0.0
    %731 = vmatprep.subr.mxu0 0.0
    %732 = vmatpush1.msra.mxu0 0.0
    %733 = vmatprep.subr.mxu0 %v619
    %734 = vmatpush1.msra.mxu0 %v616
    %735 = vmatprep.subr.mxu0 0.0
    %736 = vmatpush2.msra.mxu0 0.0
    %737 = vmatprep.subr.mxu0 0.0
    %738 = vmatpush2.msra.mxu0 0.0
    %739 = vmatprep.subr.mxu0 0.0
    %740 = vmatpush2.msra.mxu0 0.0
    %741 = vmatprep.subr.mxu0 0.0
    %742 = vmatpush2.msra.mxu0 0.0
    %743 = vmatprep.subr.mxu0 0.0
    %744 = vmatpush2.msra.mxu0 0.0
    %745 = vmatprep.subr.mxu0 0.0
    %746 = vmatpush2.msra.mxu0 0.0
    %747 = vmatprep.subr.mxu0 0.0
    %748 = vmatpush2.msra.mxu0 0.0
    %749 = vmatprep.subr.mxu0 0.0
    %750 = vmatpush2.msra.mxu0 0.0
    %751 = vmatprep.subr.mxu0 0.0
    %752 = vmatpush2.msra.mxu0 0.0
    %753 = vmatprep.subr.mxu0 0.0
    %754 = vmatpush2.msra.mxu0 0.0
    %755 = vmatprep.subr.mxu0 0.0
    %756 = vmatpush2.msra.mxu0 0.0
    %757 = vmatprep.subr.mxu0 0.0
    %758 = vmatpush2.msra.mxu0 0.0
    %759 = vmatprep.subr.mxu0 0.0
    %760 = vmatpush2.msra.mxu0 0.0
    %761 = vmatprep.subr.mxu0 0.0
    %762 = vmatpush2.msra.mxu0 0.0
    %763 = vmatprep.subr.mxu0 0.0
    %764 = vmatpush2.msra.mxu0 0.0
    %765 = vmatprep.subr.mxu0 0.0
    %766 = vmatpush2.msra.mxu0 0.0
    %767 = vmatprep.mubr.f32.mxu0 0.0
    %768 = vmatmul.mubr.f32.gmra.mxu0 %v46
    %v769 = vpop.f32.mrf.mxu0
    %v770 = vadd.f32 0.0, %v769
    %v771 = vpop.f32.mrf.mxu0
    %v772 = vadd.f32 0.0, %v771
    %773 = vmatprep.mubr.f32.mxu0 0.0
    %774 = vmatmul.mubr.f32.gmra.mxu0 %v49
    %v775 = vpop.f32.mrf.mxu0
    %v776 = vadd.f32 0.0, %v775
    %v777 = vpop.f32.mrf.mxu0
    %v778 = vadd.f32 0.0, %v777
    %779 = vmatprep.mubr.f32.mxu0 0.0
    %780 = vmatmul.mubr.f32.gmra.mxu0 %v52
    %v781 = vpop.f32.mrf.mxu0
    %v782 = vadd.f32 0.0, %v781
    %v783 = vpop.f32.mrf.mxu0
    %v784 = vadd.f32 0.0, %v783
    %785 = vdwg.mxu0
    %s786 = scalar_lea.vmem [#allocation2], 768
    %v787 = vld [vmem:[%s786] sm:$0xff]
    %v788 = vld [vmem:[%s786 + $0x8] sm:$0xff]
    %v789 = vld [vmem:[%s786 + $0x10] sm:$0xff]
    %v790 = vld [vmem:[%s786 + $0x18] sm:$0xff]
    %v791 = vld [vmem:[%s786 + $0x20] sm:$0xff]
    %v792 = vld [vmem:[%s786 + $0x28] sm:$0xff]
    %v793 = vld [vmem:[%s786 + $0x30] sm:$0xff]
    %v794 = vld [vmem:[%s786 + $0x38] sm:$0xff]
    %v795 = vld [vmem:[%s786 + $0x40] sm:$0xff]
    %v796 = vld [vmem:[%s786 + $0x48] sm:$0xff]
    %v797 = vld [vmem:[%s786 + $0x50] sm:$0xff]
    %v798 = vld [vmem:[%s786 + $0x58] sm:$0xff]
    %v799 = vld [vmem:[%s786 + $0x60] sm:$0xff]
    %v800 = vld [vmem:[%s786 + $0x68] sm:$0xff]
    %v801 = vld [vmem:[%s786 + $0x70] sm:$0xff]
    %v802 = vld [vmem:[%s786 + $0x78] sm:$0xff]
    %v803 = vld [vmem:[%s786 + $0x80] sm:$0xff]
    %v804 = vld [vmem:[%s786 + $0x88] sm:$0xff]
    %v805 = vld [vmem:[%s786 + $0x90] sm:$0xff]
    %v806 = vld [vmem:[%s786 + $0x98] sm:$0xff]
    %v807 = vld [vmem:[%s786 + $0xa0] sm:$0xff]
    %v808 = vld [vmem:[%s786 + $0xa8] sm:$0xff]
    %v809 = vld [vmem:[%s786 + $0xb0] sm:$0xff]
    %v810 = vld [vmem:[%s786 + $0xb8] sm:$0xff]
    %v811 = vld [vmem:[%s786 + $0xc0] sm:$0xff]
    %v812 = vld [vmem:[%s786 + $0xc8] sm:$0xff]
    %v813 = vld [vmem:[%s786 + $0xd0] sm:$0xff]
    %v814 = vld [vmem:[%s786 + $0xd8] sm:$0xff]
    %v815 = vld [vmem:[%s786 + $0xe0] sm:$0xff]
    %v816 = vld [vmem:[%s786 + $0xe8] sm:$0xff]
    %v817 = vld [vmem:[%s786 + $0xf0] sm:$0xff]
    %v818 = vld [vmem:[%s786 + $0xf8] sm:$0xff]
    %v819 = vld [vmem:[%s786 + $0x100] sm:$0xff]
    %v820 = vld [vmem:[%s786 + $0x108] sm:$0xff]
    %v821 = vld [vmem:[%s786 + $0x110] sm:$0xff]
    %v822 = vld [vmem:[%s786 + $0x118] sm:$0xff]
    %v823 = vld [vmem:[%s786 + $0x120] sm:$0xff]
    %v824 = vld [vmem:[%s786 + $0x128] sm:$0xff]
    %v825 = vld [vmem:[%s786 + $0x130] sm:$0xff]
    %v826 = vld [vmem:[%s786 + $0x138] sm:$0xff]
    %v827 = vld [vmem:[%s786 + $0x140] sm:$0xff]
    %v828 = vld [vmem:[%s786 + $0x148] sm:$0xff]
    %v829 = vld [vmem:[%s786 + $0x150] sm:$0xff]
    %v830 = vld [vmem:[%s786 + $0x158] sm:$0xff]
    %v831 = vld [vmem:[%s786 + $0x160] sm:$0xff]
    %v832 = vld [vmem:[%s786 + $0x168] sm:$0xff]
    %v833 = vld [vmem:[%s786 + $0x170] sm:$0xff]
    %v834 = vld [vmem:[%s786 + $0x178] sm:$0xff]
    %v835 = vld [vmem:[%s786 + $0x180] sm:$0xff]
    %v836 = vld [vmem:[%s786 + $0x188] sm:$0xff]
    %v837 = vld [vmem:[%s786 + $0x190] sm:$0xff]
    %v838 = vld [vmem:[%s786 + $0x198] sm:$0xff]
    %v839 = vld [vmem:[%s786 + $0x1a0] sm:$0xff]
    %v840 = vld [vmem:[%s786 + $0x1a8] sm:$0xff]
    %v841 = vld [vmem:[%s786 + $0x1b0] sm:$0xff]
    %v842 = vld [vmem:[%s786 + $0x1b8] sm:$0xff]
    %v843 = vld [vmem:[%s786 + $0x1c0] sm:$0xff]
    %v844 = vld [vmem:[%s786 + $0x1c8] sm:$0xff]
    %v845 = vld [vmem:[%s786 + $0x1d0] sm:$0xff]
    %v846 = vld [vmem:[%s786 + $0x1d8] sm:$0xff]
    %v847 = vld [vmem:[%s786 + $0x1e0] sm:$0xff]
    %v848 = vld [vmem:[%s786 + $0x1e8] sm:$0xff]
    %v849 = vld [vmem:[%s786 + $0x1f0] sm:$0xff]
    %v850 = vld [vmem:[%s786 + $0x1f8] sm:$0xff]
    %v851 = vld [vmem:[%s786 + $0x200] sm:$0xff]
    %v852 = vld [vmem:[%s786 + $0x208] sm:$0xff]
    %v853 = vld [vmem:[%s786 + $0x210] sm:$0xff]
    %v854 = vld [vmem:[%s786 + $0x218] sm:$0xff]
    %v855 = vld [vmem:[%s786 + $0x220] sm:$0xff]
    %v856 = vld [vmem:[%s786 + $0x228] sm:$0xff]
    %v857 = vld [vmem:[%s786 + $0x230] sm:$0xff]
    %v858 = vld [vmem:[%s786 + $0x238] sm:$0xff]
    %v859 = vld [vmem:[%s786 + $0x240] sm:$0xff]
    %v860 = vld [vmem:[%s786 + $0x248] sm:$0xff]
    %v861 = vld [vmem:[%s786 + $0x250] sm:$0xff]
    %v862 = vld [vmem:[%s786 + $0x258] sm:$0xff]
    %v863 = vld [vmem:[%s786 + $0x260] sm:$0xff]
    %v864 = vld [vmem:[%s786 + $0x268] sm:$0xff]
    %v865 = vld [vmem:[%s786 + $0x270] sm:$0xff]
    %v866 = vld [vmem:[%s786 + $0x278] sm:$0xff]
    %v867 = vld [vmem:[%s786 + $0x280] sm:$0xff]
    %v868 = vld [vmem:[%s786 + $0x288] sm:$0xff]
    %v869 = vld [vmem:[%s786 + $0x290] sm:$0xff]
    %v870 = vld [vmem:[%s786 + $0x298] sm:$0xff]
    %v871 = vld [vmem:[%s786 + $0x2a0] sm:$0xff]
    %v872 = vld [vmem:[%s786 + $0x2a8] sm:$0xff]
    %v873 = vld [vmem:[%s786 + $0x2b0] sm:$0xff]
    %v874 = vld [vmem:[%s786 + $0x2b8] sm:$0xff]
    %v875 = vld [vmem:[%s786 + $0x2c0] sm:$0xff]
    %v876 = vld [vmem:[%s786 + $0x2c8] sm:$0xff]
    %v877 = vld [vmem:[%s786 + $0x2d0] sm:$0xff]
    %v878 = vld [vmem:[%s786 + $0x2d8] sm:$0xff]
    %v879 = vld [vmem:[%s786 + $0x2e0] sm:$0xff]
    %v880 = vld [vmem:[%s786 + $0x2e8] sm:$0xff]
    %v881 = vld [vmem:[%s786 + $0x2f0] sm:$0xff]
    %v882 = vld [vmem:[%s786 + $0x2f8] sm:$0xff]
    %s883 = scalar_lea.vmem %s3, 1
    %v884 = vld [vmem:[%s883] sm:$0x1]
    %v886 = vlaneseq
    %v887 = vshrl.u32 %v886, 7
    %v888 = vsub.s32 0, %v887
    %v889 = vrot.slane %v884, %v888
    %891 = vmatprep.subr.mxu0 0.0
    %892 = vmatpush1.msra.mxu0 %v802
    %893 = vmatprep.subr.mxu0 0.0
    %894 = vmatpush1.msra.mxu0 %v801
    %895 = vmatprep.subr.mxu0 0.0
    %896 = vmatpush1.msra.mxu0 %v800
    %897 = vmatprep.subr.mxu0 0.0
    %898 = vmatpush1.msra.mxu0 %v799
    %899 = vmatprep.subr.mxu0 0.0
    %900 = vmatpush1.msra.mxu0 %v798
    %901 = vmatprep.subr.mxu0 0.0
    %902 = vmatpush1.msra.mxu0 %v797
    %903 = vmatprep.subr.mxu0 0.0
    %904 = vmatpush1.msra.mxu0 %v796
    %905 = vmatprep.subr.mxu0 0.0
    %906 = vmatpush1.msra.mxu0 %v795
    %907 = vmatprep.subr.mxu0 0.0
    %908 = vmatpush1.msra.mxu0 %v794
    %909 = vmatprep.subr.mxu0 0.0
    %910 = vmatpush1.msra.mxu0 %v793
    %911 = vmatprep.subr.mxu0 0.0
    %912 = vmatpush1.msra.mxu0 %v792
    %913 = vmatprep.subr.mxu0 0.0
    %914 = vmatpush1.msra.mxu0 %v791
    %915 = vmatprep.subr.mxu0 0.0
    %916 = vmatpush1.msra.mxu0 %v790
    %917 = vmatprep.subr.mxu0 0.0
    %918 = vmatpush1.msra.mxu0 %v789
    %919 = vmatprep.subr.mxu0 0.0
    %920 = vmatpush1.msra.mxu0 %v788
    %921 = vmatprep.subr.mxu0 0.0
    %922 = vmatpush1.msra.mxu0 %v787
    %923 = vmatprep.subr.mxu0 0.0
    %924 = vmatpush2.msra.mxu0 %v818
    %925 = vmatprep.subr.mxu0 0.0
    %926 = vmatpush2.msra.mxu0 %v817
    %927 = vmatprep.subr.mxu0 0.0
    %928 = vmatpush2.msra.mxu0 %v816
    %929 = vmatprep.subr.mxu0 0.0
    %930 = vmatpush2.msra.mxu0 %v815
    %931 = vmatprep.subr.mxu0 0.0
    %932 = vmatpush2.msra.mxu0 %v814
    %933 = vmatprep.subr.mxu0 0.0
    %934 = vmatpush2.msra.mxu0 %v813
    %935 = vmatprep.subr.mxu0 0.0
    %936 = vmatpush2.msra.mxu0 %v812
    %937 = vmatprep.subr.mxu0 0.0
    %938 = vmatpush2.msra.mxu0 %v811
    %939 = vmatprep.subr.mxu0 0.0
    %940 = vmatpush2.msra.mxu0 %v810
    %941 = vmatprep.subr.mxu0 0.0
    %942 = vmatpush2.msra.mxu0 %v809
    %943 = vmatprep.subr.mxu0 0.0
    %944 = vmatpush2.msra.mxu0 %v808
    %945 = vmatprep.subr.mxu0 0.0
    %946 = vmatpush2.msra.mxu0 %v807
    %947 = vmatprep.subr.mxu0 0.0
    %948 = vmatpush2.msra.mxu0 %v806
    %949 = vmatprep.subr.mxu0 0.0
    %950 = vmatpush2.msra.mxu0 %v805
    %951 = vmatprep.subr.mxu0 0.0
    %952 = vmatpush2.msra.mxu0 %v804
    %953 = vmatprep.subr.mxu0 0.0
    %954 = vmatpush2.msra.mxu0 %v803
    %955 = vmatprep.mubr.f32.mxu0 %v689
    %956 = vmatmul.mubr.f32.gmra.mxu0 %v687
    %v957 = vpop.f32.mrf.mxu0
    %v958 = vadd.f32 %v889, %v957
    %v959 = vpop.f32.mrf.mxu0
    %960 = vmatprep.mubr.f32.mxu0 %v772
    %961 = vmatmul.mubr.f32.gmra.mxu0 %v770
    %v962 = vpop.f32.mrf.mxu0
    %v963 = vadd.f32 %v889, %v962
    %v964 = vpop.f32.mrf.mxu0
    %965 = vdwg.mxu0
    %966 = vmatprep.subr.mxu0 0.0
    %967 = vmatpush1.msra.mxu0 %v834
    %968 = vmatprep.subr.mxu0 0.0
    %969 = vmatpush1.msra.mxu0 %v833
    %970 = vmatprep.subr.mxu0 0.0
    %971 = vmatpush1.msra.mxu0 %v832
    %972 = vmatprep.subr.mxu0 0.0
    %973 = vmatpush1.msra.mxu0 %v831
    %974 = vmatprep.subr.mxu0 0.0
    %975 = vmatpush1.msra.mxu0 %v830
    %976 = vmatprep.subr.mxu0 0.0
    %977 = vmatpush1.msra.mxu0 %v829
    %978 = vmatprep.subr.mxu0 0.0
    %979 = vmatpush1.msra.mxu0 %v828
    %980 = vmatprep.subr.mxu0 0.0
    %981 = vmatpush1.msra.mxu0 %v827
    %982 = vmatprep.subr.mxu0 0.0
    %983 = vmatpush1.msra.mxu0 %v826
    %984 = vmatprep.subr.mxu0 0.0
    %985 = vmatpush1.msra.mxu0 %v825
    %986 = vmatprep.subr.mxu0 0.0
    %987 = vmatpush1.msra.mxu0 %v824
    %988 = vmatprep.subr.mxu0 0.0
    %989 = vmatpush1.msra.mxu0 %v823
    %990 = vmatprep.subr.mxu0 0.0
    %991 = vmatpush1.msra.mxu0 %v822
    %992 = vmatprep.subr.mxu0 0.0
    %993 = vmatpush1.msra.mxu0 %v821
    %994 = vmatprep.subr.mxu0 0.0
    %995 = vmatpush1.msra.mxu0 %v820
    %996 = vmatprep.subr.mxu0 0.0
    %997 = vmatpush1.msra.mxu0 %v819
    %998 = vmatprep.subr.mxu0 0.0
    %999 = vmatpush2.msra.mxu0 %v850
    %1000 = vmatprep.subr.mxu0 0.0
    %1001 = vmatpush2.msra.mxu0 %v849
    %1002 = vmatprep.subr.mxu0 0.0
    %1003 = vmatpush2.msra.mxu0 %v848
    %1004 = vmatprep.subr.mxu0 0.0
    %1005 = vmatpush2.msra.mxu0 %v847
    %1006 = vmatprep.subr.mxu0 0.0
    %1007 = vmatpush2.msra.mxu0 %v846
    %1008 = vmatprep.subr.mxu0 0.0
    %1009 = vmatpush2.msra.mxu0 %v845
    %1010 = vmatprep.subr.mxu0 0.0
    %1011 = vmatpush2.msra.mxu0 %v844
    %1012 = vmatprep.subr.mxu0 0.0
    %1013 = vmatpush2.msra.mxu0 %v843
    %1014 = vmatprep.subr.mxu0 0.0
    %1015 = vmatpush2.msra.mxu0 %v842
    %1016 = vmatprep.subr.mxu0 0.0
    %1017 = vmatpush2.msra.mxu0 %v841
    %1018 = vmatprep.subr.mxu0 0.0
    %1019 = vmatpush2.msra.mxu0 %v840
    %1020 = vmatprep.subr.mxu0 0.0
    %1021 = vmatpush2.msra.mxu0 %v839
    %1022 = vmatprep.subr.mxu0 0.0
    %1023 = vmatpush2.msra.mxu0 %v838
    %1024 = vmatprep.subr.mxu0 0.0
    %1025 = vmatpush2.msra.mxu0 %v837
    %1026 = vmatprep.subr.mxu0 0.0
    %1027 = vmatpush2.msra.mxu0 %v836
    %1028 = vmatprep.subr.mxu0 0.0
    %1029 = vmatpush2.msra.mxu0 %v835
    %1030 = vmatprep.mubr.f32.mxu0 %v695
    %1031 = vmatmul.mubr.f32.gmra.mxu0 %v693
    %v1032 = vpop.f32.mrf.mxu0
    %v1033 = vadd.f32 %v958, %v1032
    %v1034 = vpop.f32.mrf.mxu0
    %1035 = vmatprep.mubr.f32.mxu0 %v778
    %1036 = vmatmul.mubr.f32.gmra.mxu0 %v776
    %v1037 = vpop.f32.mrf.mxu0
    %v1038 = vadd.f32 %v963, %v1037
    %v1039 = vpop.f32.mrf.mxu0
    %1040 = vdwg.mxu0
    %1041 = vmatprep.subr.mxu0 0.0
    %1042 = vmatpush1.msra.mxu0 %v866
    %1043 = vmatprep.subr.mxu0 0.0
    %1044 = vmatpush1.msra.mxu0 %v865
    %1045 = vmatprep.subr.mxu0 0.0
    %1046 = vmatpush1.msra.mxu0 %v864
    %1047 = vmatprep.subr.mxu0 0.0
    %1048 = vmatpush1.msra.mxu0 %v863
    %1049 = vmatprep.subr.mxu0 0.0
    %1050 = vmatpush1.msra.mxu0 %v862
    %1051 = vmatprep.subr.mxu0 0.0
    %1052 = vmatpush1.msra.mxu0 %v861
    %1053 = vmatprep.subr.mxu0 0.0
    %1054 = vmatpush1.msra.mxu0 %v860
    %1055 = vmatprep.subr.mxu0 0.0
    %1056 = vmatpush1.msra.mxu0 %v859
    %1057 = vmatprep.subr.mxu0 0.0
    %1058 = vmatpush1.msra.mxu0 %v858
    %1059 = vmatprep.subr.mxu0 0.0
    %1060 = vmatpush1.msra.mxu0 %v857
    %1061 = vmatprep.subr.mxu0 0.0
    %1062 = vmatpush1.msra.mxu0 %v856
    %1063 = vmatprep.subr.mxu0 0.0
    %1064 = vmatpush1.msra.mxu0 %v855
    %1065 = vmatprep.subr.mxu0 0.0
    %1066 = vmatpush1.msra.mxu0 %v854
    %1067 = vmatprep.subr.mxu0 0.0
    %1068 = vmatpush1.msra.mxu0 %v853
    %1069 = vmatprep.subr.mxu0 0.0
    %1070 = vmatpush1.msra.mxu0 %v852
    %1071 = vmatprep.subr.mxu0 0.0
    %1072 = vmatpush1.msra.mxu0 %v851
    %1073 = vmatprep.subr.mxu0 0.0
    %1074 = vmatpush2.msra.mxu0 %v882
    %1075 = vmatprep.subr.mxu0 0.0
    %1076 = vmatpush2.msra.mxu0 %v881
    %1077 = vmatprep.subr.mxu0 0.0
    %1078 = vmatpush2.msra.mxu0 %v880
    %1079 = vmatprep.subr.mxu0 0.0
    %1080 = vmatpush2.msra.mxu0 %v879
    %1081 = vmatprep.subr.mxu0 0.0
    %1082 = vmatpush2.msra.mxu0 %v878
    %1083 = vmatprep.subr.mxu0 0.0
    %1084 = vmatpush2.msra.mxu0 %v877
    %1085 = vmatprep.subr.mxu0 0.0
    %1086 = vmatpush2.msra.mxu0 %v876
    %1087 = vmatprep.subr.mxu0 0.0
    %1088 = vmatpush2.msra.mxu0 %v875
    %1089 = vmatprep.subr.mxu0 0.0
    %1090 = vmatpush2.msra.mxu0 %v874
    %1091 = vmatprep.subr.mxu0 0.0
    %1092 = vmatpush2.msra.mxu0 %v873
    %1093 = vmatprep.subr.mxu0 0.0
    %1094 = vmatpush2.msra.mxu0 %v872
    %1095 = vmatprep.subr.mxu0 0.0
    %1096 = vmatpush2.msra.mxu0 %v871
    %1097 = vmatprep.subr.mxu0 0.0
    %1098 = vmatpush2.msra.mxu0 %v870
    %1099 = vmatprep.subr.mxu0 0.0
    %1100 = vmatpush2.msra.mxu0 %v869
    %1101 = vmatprep.subr.mxu0 0.0
    %1102 = vmatpush2.msra.mxu0 %v868
    %1103 = vmatprep.subr.mxu0 0.0
    %1104 = vmatpush2.msra.mxu0 %v867
    %1105 = vmatprep.mubr.f32.mxu0 %v701
    %1106 = vmatmul.mubr.f32.gmra.mxu0 %v699
    %v1107 = vpop.f32.mrf.mxu0
    %v1108 = vadd.f32 %v1033, %v1107
    %v1109 = vpop.f32.mrf.mxu0
    %1110 = vmatprep.mubr.f32.mxu0 %v784
    %1111 = vmatmul.mubr.f32.gmra.mxu0 %v782
    %v1112 = vpop.f32.mrf.mxu0
    %v1113 = vadd.f32 %v1038, %v1112
    %v1114 = vpop.f32.mrf.mxu0
    %1115 = vdwg.mxu0
    %v1116 = vxor.u32 %v1108, 2147483648
    %v1117 = vxor.u32 %v1113, 2147483648
    %v1118 = vmul.f32 %v1116, 1.442695
    %v1119 = vpow.pop %v1118
    %v1120 = vmul.f32 %v1117, 1.442695
    %v1121 = vpow.pop %v1120
    %v1122 = vadd.f32 %v1119, 1.0
    %v1123 = vadd.f32 %v1121, 1.0
    %v1124 = vrcp.pop %v1122
    %v1125 = vmul.f32 1.0, %v1124
    %v1126 = vrcp.pop %v1123
    %v1127 = vmul.f32 1.0, %v1126
    %v1128 = vtanh.pop %v1108
    %v1129 = vtanh.pop %v1113
    %s1130 = scalar_lea.vmem %s5, 16
    %v1131 = vld [vmem:[%s1130] sm:$0xff]
    %v1132 = vld [vmem:[%s1130 + $0x8] sm:$0xff]
    %1135 = vrot.lane.b32.xlu0 %v1131, 32
    %v1136 = vpop.permute.xlu0 %1135
    %1137 = vrot.lane.b32.xlu0 %v1132, 32
    %v1138 = vpop.permute.xlu0 %1137
    %v1141 = vmul.f32 %v1125, %v1136
    %v1142 = vmul.f32 %v1127, %v1138
    %1145 = vrot.lane.b32.xlu0 %v1128, 32
    %v1146 = vpop.permute.xlu0 %1145
    %1147 = vrot.lane.b32.xlu0 %v1129, 32
    %v1148 = vpop.permute.xlu0 %1147
    %v1151 = vmul.f32 %v1125, %v1146
    %v1152 = vmul.f32 %v1127, %v1148
    %1155 = vrot.lane.b32.xlu0 %v1151, 32
    %v1156 = vpop.permute.xlu0 %1155
    %1157 = vrot.lane.b32.xlu0 %v1152, 32
    %v1158 = vpop.permute.xlu0 %1157
    %v1161 = vadd.f32 %v1141, %v1156
    %v1162 = vadd.f32 %v1142, %v1158
    %v1163 = vtanh.pop %v1161
    %v1164 = vtanh.pop %v1162
    %1167 = vrot.lane.b32.xlu0 %v1163, 32
    %v1168 = vpop.permute.xlu0 %1167
    %1169 = vrot.lane.b32.xlu0 %v1164, 32
    %v1170 = vpop.permute.xlu0 %1169
    %v1173 = vmul.f32 %v1125, %v1168
    %v1174 = vmul.f32 %v1127, %v1170
    %1177 = vrot.lane.b32.xlu0 %v1161, 64
    %v1178 = vpop.permute.xlu0 %1177
    %1179 = vrot.lane.b32.xlu0 %v1162, 64
    %v1180 = vpop.permute.xlu0 %1179
    %v1183 = vsel %vm614, %v609, %v592
    %v1184 = vsel %vm614, %v611, %v593
    %vm1185 = vcmask 523264
    %v1186 = vsel %vm1185, %v1183, %v1173
    %v1187 = vsel %vm1185, %v1184, %v1174
    %vm1188 = vcmask 785408
    %v1189 = vsel %vm1188, %v1186, %v1178
    %v1190 = vsel %vm1188, %v1187, %v1180
    %1191 = vst [vmem:[%s6] sm:$0xff] %v1189
    %1192 = vst [vmem:[%s6 + $0x8] sm:$0xff] %v1190
    // Predicated region
    $region30: #{decoder_forward.1} parent=1 // pred_check
      _
    $region31: #{decoder_forward.1} parent=1 // pred_check_branch
      %1194 = sbr.rel (0) target = $region33
    $region32: #{decoder_forward.1} parent=1 // pred_region
      _
    $region33: #{decoder_forward.1} parent=1 // pred_fallthru
      _
    // Predicated region
    $region34: #{decoder_forward.1} parent=1 // pred_check
      _
    $region35: #{decoder_forward.1} parent=1 // pred_check_branch
      %1196 = sbr.rel (0) target = $region37
    $region36: #{decoder_forward.1} parent=1 // pred_region
      _
    $region37: #{decoder_forward.1} parent=1 // pred_fallthru
      _
    %1197 = vsyncpa [#allocation3], 1

</llo_original>
